<compile_context>
chip_gen: v7x
topology: tpu7x:2x2x1
jax: 0.10.0
libtpu: 0.0.40
codegen_flags: <defaults>
</compile_context>

<pallas_src>
import functools

import jax
import jax.numpy as jnp
from jax.experimental import pallas as pl
from jax.experimental.pallas import tpu as pltpu


def _baseoc_flash_kernel(xq_ref, xkv_ref, wq_ref, bq_ref, wkv_ref, bkv_ref,
                         wfold_ref, wfx_ref, bf_ref, out_ref,
                         m_sc, l_sc, acc_sc, q_sc, *, c_key):
    ki = pl.program_id(2)

    @pl.when(ki == 0)
    def _():
        m_sc[...] = jnp.full(m_sc.shape, -jnp.inf, dtype=jnp.float32)
        l_sc[...] = jnp.zeros(l_sc.shape, dtype=jnp.float32)
        acc_sc[...] = jnp.zeros(acc_sc.shape, dtype=jnp.float32)
        # Query projection once per (batch, q-tile); key_scale already folded
        # into wq / bq by the wrapper.
        q = (jnp.dot(xq_ref[0], wq_ref[...],
                     preferred_element_type=jnp.float32) + bq_ref[...])     # (tq, ck)
        q_sc[...] = q.astype(jnp.bfloat16)

    xkv = xkv_ref[0]                                                        # (tk, C)  bf16

    # Fused K|V projection: one matmul over the kv tile, then slice.
    kv = jnp.dot(xkv, wkv_ref[...],
                 preferred_element_type=jnp.float32) + bkv_ref[...]         # (tk, ck+cv)
    k = kv[:, :c_key].astype(jnp.bfloat16)
    v = kv[:, c_key:].astype(jnp.bfloat16)

    # Online (flash) softmax over the kv-tile axis.
    s = jnp.dot(q_sc[...], k.T, preferred_element_type=jnp.float32)         # (tq, tk)
    m_prev = m_sc[...]
    m_new = jnp.maximum(m_prev, jnp.max(s, axis=-1, keepdims=True))
    alpha = jnp.exp(m_prev - m_new)
    p = jnp.exp(s - m_new)                                                  # unnormalized
    l_sc[...] = alpha * l_sc[...] + jnp.sum(p, axis=-1, keepdims=True)
    acc_sc[...] = alpha * acc_sc[...] + jnp.dot(
        p.astype(jnp.bfloat16), v, preferred_element_type=jnp.float32)      # (tq, cv)
    m_sc[...] = m_new

    @pl.when(ki == pl.num_programs(2) - 1)
    def _():
        # Deferred normalization (EUP reciprocal), then the folded
        # (W -> final conv) projection plus the feats half of the concat.
        inv_l = pl.reciprocal(l_sc[...], approx=True)
        ctx = (acc_sc[...] * inv_l).astype(jnp.bfloat16)                    # (tq, cv)
        out = (jnp.dot(ctx, wfold_ref[...], preferred_element_type=jnp.float32)
               + jnp.dot(xq_ref[0], wfx_ref[...], preferred_element_type=jnp.float32)
               + bf_ref[...])
        out_ref[0] = out.astype(out_ref.dtype)


def init_params(key, c_in, c_key, c_val, c_out):
    """Effective (BN-folded, eval-mode) parameters of the PyTorch module."""
    eps = 1e-5
    s_bn = 1.0 / jnp.sqrt(jnp.float32(1.0 + eps))   # fresh BN: gamma=1, beta=0, mean=0, var=1
    ks = jax.random.split(key, 8)

    def rnd(k, shape, scale=0.1):
        return (scale * jax.random.normal(k, shape)).astype(jnp.float32)

    def fold_conv_bn_conv_bn(k):
        k1, k2, k3, k4 = jax.random.split(k, 4)
        w1, b1 = rnd(k1, (c_in, c_key)), rnd(k2, (c_key,))
        w2, b2 = rnd(k3, (c_key, c_key)), rnd(k4, (c_key,))
        w_eff = (w1 * s_bn) @ (w2 * s_bn)
        b_eff = ((b1 * s_bn) @ w2 + b2) * s_bn
        return w_eff, b_eff.reshape(1, c_key)

    wq, bq = fold_conv_bn_conv_bn(ks[0])
    wk, bk = fold_conv_bn_conv_bn(ks[1])
    wv = rnd(ks[2], (c_in, c_val))
    bv = rnd(ks[3], (c_val,)).reshape(1, c_val)
    # NOTE: the original module zero-inits W (nn.init.constant_); small random
    # values are used so the attention path is numerically exercised.
    ww = rnd(ks[4], (c_val, c_in))
    bw = rnd(ks[5], (c_in,)).reshape(1, c_in)
    # conv_bn_dropout: Conv2d(2C -> out) + BN (folded) + Dropout2d (identity, eval).
    wf = rnd(ks[6], (2 * c_in, c_out)) * s_bn
    bf = (rnd(ks[7], (c_out,)) * s_bn).reshape(1, c_out)
    return dict(wq=wq, bq=bq, wk=wk, bk=bk, wv=wv, bv=bv, ww=ww, bw=bw,
                wfc=wf[:c_in], wfx=wf[c_in:], bf=bf)


def _fold_for_kernel(params, key_channels):
    """Wrapper-side algebra: fold key_scale, fuse K|V, fold ww @ wfc; cast to bf16."""
    scale = jnp.float32(key_channels) ** -0.5
    wq = (params["wq"] * scale).astype(jnp.bfloat16)
    bq = (params["bq"] * scale).astype(jnp.float32)
    wkv = jnp.concatenate([params["wk"], params["wv"]], axis=1).astype(jnp.bfloat16)
    bkv = jnp.concatenate([params["bk"], params["bv"]], axis=1).astype(jnp.float32)
    w_fold = (params["ww"] @ params["wfc"]).astype(jnp.bfloat16)
    b_fold = (params["bw"] @ params["wfc"] + params["bf"]).astype(jnp.float32)
    wfx = params["wfx"].astype(jnp.bfloat16)
    return wq, bq, wkv, bkv, w_fold, wfx, b_fold


def base_oc_forward(x_nchw, params, key_channels, *, tq=256, tk=256,
                    out_dtype=jnp.float32):
    B, C, H, W = x_nchw.shape
    L = H * W
    x = jnp.transpose(x_nchw, (0, 2, 3, 1)).reshape(B, L, C).astype(jnp.bfloat16)

    wq, bq, wkv, bkv, w_fold, wfx, b_fold = _fold_for_kernel(params, key_channels)
    c_key = params["wq"].shape[1]
    c_val = params["wv"].shape[1]
    c_out = b_fold.shape[-1]

    tq = min(tq, L)
    tk = min(tk, L)
    # TODO(synk): ragged L (not a multiple of the tile) would need edge masking.
    assert L % tq == 0 and L % tk == 0, (L, tq, tk)
    nq, nk = L // tq, L // tk

    kernel = functools.partial(_baseoc_flash_kernel, c_key=c_key)

    def wspec(a):  # full-array (all weights/biases are 2-D and small)
        return pl.BlockSpec(a.shape, lambda b, qi, ki: (0, 0))

    weights = (wq, bq, wkv, bkv, w_fold, wfx, b_fold)

    out = pl.pallas_call(
        kernel,
        out_shape=jax.ShapeDtypeStruct((B, L, c_out), out_dtype),
        grid_spec=pltpu.PrefetchScalarGridSpec(
            num_scalar_prefetch=0,
            grid=(B, nq, nk),
            in_specs=[pl.BlockSpec((1, tq, C), lambda b, qi, ki: (b, qi, 0)),   # query tile
                      pl.BlockSpec((1, tk, C), lambda b, qi, ki: (b, ki, 0))]   # k/v tile
                     + [wspec(a) for a in weights],
            out_specs=pl.BlockSpec((1, tq, c_out), lambda b, qi, ki: (b, qi, 0)),
            scratch_shapes=[pltpu.VMEM((tq, 1), jnp.float32),         # running max m
                            pltpu.VMEM((tq, 1), jnp.float32),         # running denom l
                            pltpu.VMEM((tq, c_val), jnp.float32),     # context accumulator
                            pltpu.VMEM((tq, c_key), jnp.bfloat16)]    # cached query tile
        ),
        compiler_params=pltpu.CompilerParams(
            dimension_semantics=("parallel", "parallel", "arbitrary")),
    )(x, x, *weights)

    return jnp.transpose(out.reshape(B, H, W, c_out), (0, 3, 1, 2))


def reference(x_nchw, params, key_channels):
    """Plain-JAX f32 reference implementing the module math directly."""
    B, C, H, W = x_nchw.shape
    L = H * W
    x = jnp.transpose(x_nchw, (0, 2, 3, 1)).reshape(B, L, C)
    q = x @ params["wq"] + params["bq"]
    k = x @ params["wk"] + params["bk"]
    v = x @ params["wv"] + params["bv"]
    sim = jnp.einsum("blk,bmk->blm", q, k) * (key_channels ** (-0.5))
    p = jax.nn.softmax(sim, axis=-1)
    ctx = jnp.einsum("blm,bmv->blv", p, v)
    ctx = ctx @ params["ww"] + params["bw"]
    out = ctx @ params["wfc"] + x @ params["wfx"] + params["bf"]
    return jnp.transpose(out.reshape(B, H, W, out.shape[-1]), (0, 3, 1, 2))


if __name__ == "__main__":
    B, C_IN, H, W = 2, 16, 16, 16        # L = 256 -> 2x2 q/kv tiles at tq=tk=128
    KEY_C, VAL_C, OUT_C = 8, 8, 16

    root = jax.random.PRNGKey(0)
    kx, kp = jax.random.split(root)
    feats = jax.random.normal(kx, (B, C_IN, H, W), dtype=jnp.float32)   # NCHW like PyTorch
    params = init_params(kp, C_IN, KEY_C, VAL_C, OUT_C)

    out = jax.block_until_ready(
        base_oc_forward(feats, params, KEY_C, tq=128, tk=128))
    ref = reference(feats, params, KEY_C)

    assert out.shape == (B, OUT_C, H, W), out.shape
    out_f32 = out.astype(jnp.float32)
    max_err = float(jnp.max(jnp.abs(out_f32 - ref)))
    # bf16 matmul operands + approx reciprocal => bf16-level tolerance vs f32 ref.
    assert jnp.allclose(out_f32, ref, atol=2e-2, rtol=2e-2), max_err
    print("KERNEL_OK")
</pallas_src>

<mosaic_0001>
module attributes {stable_mosaic.version = 11 : i64} {
  func.func @_baseoc_flash_kernel(%arg0: i32, %arg1: i32, %arg2: i32, %arg3: memref<1x128x16xbf16, #tpu.memory_space<vmem>>, %arg4: memref<1x128x16xbf16, #tpu.memory_space<vmem>>, %arg5: memref<16x8xbf16, #tpu.memory_space<vmem>>, %arg6: memref<1x8xf32, #tpu.memory_space<vmem>>, %arg7: memref<16x16xbf16, #tpu.memory_space<vmem>>, %arg8: memref<1x16xf32, #tpu.memory_space<vmem>>, %arg9: memref<8x16xbf16, #tpu.memory_space<vmem>>, %arg10: memref<16x16xbf16, #tpu.memory_space<vmem>>, %arg11: memref<1x16xf32, #tpu.memory_space<vmem>>, %arg12: memref<1x128x16xf32, #tpu.memory_space<vmem>>, %arg13: memref<128x1xf32, #tpu.memory_space<vmem>>, %arg14: memref<128x1xf32, #tpu.memory_space<vmem>>, %arg15: memref<128x8xf32, #tpu.memory_space<vmem>>, %arg16: memref<128x8xbf16, #tpu.memory_space<vmem>>) attributes {dimension_semantics = [#tpu.dimension_semantics<parallel>, #tpu.dimension_semantics<parallel>, #tpu.dimension_semantics<arbitrary>], iteration_bounds = array<i64: 2, 2, 2>, scalar_prefetch = 0 : i64, scratch_operands = 4 : i64, tpu.core_type = #tpu.core_type<tc>, window_params = [{transform_indices = @transform_0, window_bounds = array<i64: 1, 128, 16>}, {transform_indices = @transform_1, window_bounds = array<i64: 1, 128, 16>}, {pipeline_mode = #tpu.pipeline_mode<synchronous>, transform_indices = @transform_2, window_bounds = array<i64: 16, 8>}, {pipeline_mode = #tpu.pipeline_mode<synchronous>, transform_indices = @transform_3, window_bounds = array<i64: 1, 8>}, {pipeline_mode = #tpu.pipeline_mode<synchronous>, transform_indices = @transform_4, window_bounds = array<i64: 16, 16>}, {pipeline_mode = #tpu.pipeline_mode<synchronous>, transform_indices = @transform_5, window_bounds = array<i64: 1, 16>}, {pipeline_mode = #tpu.pipeline_mode<synchronous>, transform_indices = @transform_6, window_bounds = array<i64: 8, 16>}, {pipeline_mode = #tpu.pipeline_mode<synchronous>, transform_indices = @transform_7, window_bounds = array<i64: 16, 16>}, {pipeline_mode = #tpu.pipeline_mode<synchronous>, transform_indices = @transform_8, window_bounds = array<i64: 1, 16>}, {transform_indices = @transform_9, window_bounds = array<i64: 1, 128, 16>}]} {
    %c0_i32 = arith.constant 0 : i32
    %0 = arith.cmpi eq, %arg2, %c0_i32 : i32
    %1 = arith.extui %0 : i1 to i32
    %c0_i32_0 = arith.constant 0 : i32
    %2 = arith.cmpi ne, %1, %c0_i32_0 : i32
    scf.if %2 {
      %cst_26 = arith.constant 0xFF800000 : f32
      %43 = vector.broadcast %cst_26 : f32 to vector<128x1xf32>
      %c0_27 = arith.constant 0 : index
      %c0_28 = arith.constant 0 : index
      %44 = vector.load %arg13[%c0_27, %c0_28] : memref<128x1xf32, #tpu.memory_space<vmem>>, vector<128x1xf32>
      tpu.vector_store %arg13[%c0_27, %c0_28], %43 {strides = array<i32>} : memref<128x1xf32, #tpu.memory_space<vmem>>, vector<128x1xf32>,
      %cst_29 = arith.constant 0.000000e+00 : f32
      %45 = vector.broadcast %cst_29 : f32 to vector<128x1xf32>
      %c0_30 = arith.constant 0 : index
      %c0_31 = arith.constant 0 : index
      %46 = vector.load %arg14[%c0_30, %c0_31] : memref<128x1xf32, #tpu.memory_space<vmem>>, vector<128x1xf32>
      tpu.vector_store %arg14[%c0_30, %c0_31], %45 {strides = array<i32>} : memref<128x1xf32, #tpu.memory_space<vmem>>, vector<128x1xf32>,
      %cst_32 = arith.constant 0.000000e+00 : f32
      %47 = vector.broadcast %cst_32 : f32 to vector<128x8xf32>
      %c0_33 = arith.constant 0 : index
      %c0_34 = arith.constant 0 : index
      %48 = vector.load %arg15[%c0_33, %c0_34] : memref<128x8xf32, #tpu.memory_space<vmem>>, vector<128x8xf32>
      tpu.vector_store %arg15[%c0_33, %c0_34], %47 {strides = array<i32>} : memref<128x8xf32, #tpu.memory_space<vmem>>, vector<128x8xf32>,
      %c0_35 = arith.constant 0 : index
      %c0_36 = arith.constant 0 : index
      %c0_37 = arith.constant 0 : index
      %49 = vector.load %arg3[%c0_35, %c0_36, %c0_37] : memref<1x128x16xbf16, #tpu.memory_space<vmem>>, vector<1x128x16xbf16>
      %50 = vector.shape_cast %49 : vector<1x128x16xbf16> to vector<128x16xbf16>
      %c0_38 = arith.constant 0 : index
      %c0_39 = arith.constant 0 : index
      %51 = vector.load %arg5[%c0_38, %c0_39] : memref<16x8xbf16, #tpu.memory_space<vmem>>, vector<16x8xbf16>
      %cst_40 = arith.constant dense<0.000000e+00> : vector<128x8xf32>
      %52 = tpu.matmul %50, %51, %cst_40 {dimension_numbers = #tpu.dot_dimension_numbers<[1], [0], [0], [1], [0, 0, 1, 1], [], []>} : vector<128x16xbf16>, vector<16x8xbf16>, vector<128x8xf32> -> vector<128x8xf32>
      %c0_41 = arith.constant 0 : index
      %c0_42 = arith.constant 0 : index
      %53 = vector.load %arg6[%c0_41, %c0_42] : memref<1x8xf32, #tpu.memory_space<vmem>>, vector<1x8xf32>
      %54 = vector.broadcast %53 : vector<1x8xf32> to vector<128x8xf32>
      %55 = arith.addf %52, %54 : vector<128x8xf32>
      %56 = arith.truncf %55 : vector<128x8xf32> to vector<128x8xbf16>
      %c0_43 = arith.constant 0 : index
      %c0_44 = arith.constant 0 : index
      %57 = vector.load %arg16[%c0_43, %c0_44] : memref<128x8xbf16, #tpu.memory_space<vmem>>, vector<128x8xbf16>
      tpu.vector_store %arg16[%c0_43, %c0_44], %56 {strides = array<i32>} : memref<128x8xbf16, #tpu.memory_space<vmem>>, vector<128x8xbf16>,
    } else {
    }
    %c0 = arith.constant 0 : index
    %c0_1 = arith.constant 0 : index
    %c0_2 = arith.constant 0 : index
    %3 = vector.load %arg4[%c0, %c0_1, %c0_2] : memref<1x128x16xbf16, #tpu.memory_space<vmem>>, vector<1x128x16xbf16>
    %4 = vector.shape_cast %3 : vector<1x128x16xbf16> to vector<128x16xbf16>
    %c0_3 = arith.constant 0 : index
    %c0_4 = arith.constant 0 : index
    %5 = vector.load %arg7[%c0_3, %c0_4] : memref<16x16xbf16, #tpu.memory_space<vmem>>, vector<16x16xbf16>
    %cst = arith.constant dense<0.000000e+00> : vector<128x16xf32>
    %6 = tpu.matmul %4, %5, %cst {dimension_numbers = #tpu.dot_dimension_numbers<[1], [0], [0], [1], [0, 0, 1, 1], [], []>} : vector<128x16xbf16>, vector<16x16xbf16>, vector<128x16xf32> -> vector<128x16xf32>
    %c0_5 = arith.constant 0 : index
    %c0_6 = arith.constant 0 : index
    %7 = vector.load %arg8[%c0_5, %c0_6] : memref<1x16xf32, #tpu.memory_space<vmem>>, vector<1x16xf32>
    %8 = vector.broadcast %7 : vector<1x16xf32> to vector<128x16xf32>
    %9 = arith.addf %6, %8 : vector<128x16xf32>
    %10 = vector.extract_strided_slice %9 {offsets = [0, 0], sizes = [128, 8], strides = [1, 1]} : vector<128x16xf32> to vector<128x8xf32>
    %11 = arith.truncf %10 : vector<128x8xf32> to vector<128x8xbf16>
    %12 = vector.extract_strided_slice %9 {offsets = [0, 8], sizes = [128, 8], strides = [1, 1]} : vector<128x16xf32> to vector<128x8xf32>
    %13 = arith.truncf %12 : vector<128x8xf32> to vector<128x8xbf16>
    %c0_7 = arith.constant 0 : index
    %c0_8 = arith.constant 0 : index
    %14 = vector.load %arg16[%c0_7, %c0_8] : memref<128x8xbf16, #tpu.memory_space<vmem>>, vector<128x8xbf16>
    %15 = tpu.transpose %11, [1, 0] : vector<128x8xbf16> -> vector<8x128xbf16>
    %cst_9 = arith.constant dense<0.000000e+00> : vector<128x128xf32>
    %16 = tpu.matmul %14, %15, %cst_9 {dimension_numbers = #tpu.dot_dimension_numbers<[1], [0], [0], [1], [0, 0, 1, 1], [], []>} : vector<128x8xbf16>, vector<8x128xbf16>, vector<128x128xf32> -> vector<128x128xf32>
    %c0_10 = arith.constant 0 : index
    %c0_11 = arith.constant 0 : index
    %17 = vector.load %arg13[%c0_10, %c0_11] : memref<128x1xf32, #tpu.memory_space<vmem>>, vector<128x1xf32>
    %cst_12 = arith.constant dense<0xFF800000> : vector<128xf32>
    %18 = vector.multi_reduction <maximumf>, %16, %cst_12 [1] : vector<128x128xf32> to vector<128xf32>
    %19 = vector.shape_cast %18 : vector<128xf32> to vector<128x1xf32>
    %20 = arith.maximumf %17, %19 : vector<128x1xf32>
    %21 = arith.subf %17, %20 : vector<128x1xf32>
    %22 = math.exp %21 : vector<128x1xf32>
    %23 = vector.broadcast %20 : vector<128x1xf32> to vector<128x128xf32>
    %24 = arith.subf %16, %23 : vector<128x128xf32>
    %25 = math.exp %24 : vector<128x128xf32>
    %c0_13 = arith.constant 0 : index
    %c0_14 = arith.constant 0 : index
    %26 = vector.load %arg14[%c0_13, %c0_14] : memref<128x1xf32, #tpu.memory_space<vmem>>, vector<128x1xf32>
    %27 = arith.mulf %22, %26 : vector<128x1xf32>
    %cst_15 = arith.constant dense<0.000000e+00> : vector<128xf32>
    %28 = vector.multi_reduction <add>, %25, %cst_15 [1] : vector<128x128xf32> to vector<128xf32>
    %29 = vector.shape_cast %28 : vector<128xf32> to vector<128x1xf32>
    %30 = arith.addf %27, %29 : vector<128x1xf32>
    %c0_16 = arith.constant 0 : index
    %c0_17 = arith.constant 0 : index
    %31 = vector.load %arg14[%c0_16, %c0_17] : memref<128x1xf32, #tpu.memory_space<vmem>>, vector<128x1xf32>
    tpu.vector_store %arg14[%c0_16, %c0_17], %30 {strides = array<i32>} : memref<128x1xf32, #tpu.memory_space<vmem>>, vector<128x1xf32>,
    %c0_18 = arith.constant 0 : index
    %c0_19 = arith.constant 0 : index
    %32 = vector.load %arg15[%c0_18, %c0_19] : memref<128x8xf32, #tpu.memory_space<vmem>>, vector<128x8xf32>
    %33 = vector.broadcast %22 : vector<128x1xf32> to vector<128x8xf32>
    %34 = arith.mulf %33, %32 : vector<128x8xf32>
    %35 = arith.truncf %25 : vector<128x128xf32> to vector<128x128xbf16>
    %cst_20 = arith.constant dense<0.000000e+00> : vector<128x8xf32>
    %36 = tpu.matmul %35, %13, %cst_20 {dimension_numbers = #tpu.dot_dimension_numbers<[1], [0], [0], [1], [0, 0, 1, 1], [], []>} : vector<128x128xbf16>, vector<128x8xbf16>, vector<128x8xf32> -> vector<128x8xf32>
    %37 = arith.addf %34, %36 : vector<128x8xf32>
    %c0_21 = arith.constant 0 : index
    %c0_22 = arith.constant 0 : index
    %38 = vector.load %arg15[%c0_21, %c0_22] : memref<128x8xf32, #tpu.memory_space<vmem>>, vector<128x8xf32>
    tpu.vector_store %arg15[%c0_21, %c0_22], %37 {strides = array<i32>} : memref<128x8xf32, #tpu.memory_space<vmem>>, vector<128x8xf32>,
    %c0_23 = arith.constant 0 : index
    %c0_24 = arith.constant 0 : index
    %39 = vector.load %arg13[%c0_23, %c0_24] : memref<128x1xf32, #tpu.memory_space<vmem>>, vector<128x1xf32>
    tpu.vector_store %arg13[%c0_23, %c0_24], %20 {strides = array<i32>} : memref<128x1xf32, #tpu.memory_space<vmem>>, vector<128x1xf32>,
    %c1_i32 = arith.constant 1 : i32
    %40 = arith.cmpi eq, %arg2, %c1_i32 : i32
    %41 = arith.extui %40 : i1 to i32
    %c0_i32_25 = arith.constant 0 : i32
    %42 = arith.cmpi ne, %41, %c0_i32_25 : i32
    scf.if %42 {
      %c0_26 = arith.constant 0 : index
      %c0_27 = arith.constant 0 : index
      %43 = vector.load %arg14[%c0_26, %c0_27] : memref<128x1xf32, #tpu.memory_space<vmem>>, vector<128x1xf32>
      %44 = tpu.reciprocal %43 {approx = true} : vector<128x1xf32> -> vector<128x1xf32>
      %c0_28 = arith.constant 0 : index
      %c0_29 = arith.constant 0 : index
      %45 = vector.load %arg15[%c0_28, %c0_29] : memref<128x8xf32, #tpu.memory_space<vmem>>, vector<128x8xf32>
      %46 = vector.broadcast %44 : vector<128x1xf32> to vector<128x8xf32>
      %47 = arith.mulf %45, %46 : vector<128x8xf32>
      %48 = arith.truncf %47 : vector<128x8xf32> to vector<128x8xbf16>
      %c0_30 = arith.constant 0 : index
      %c0_31 = arith.constant 0 : index
      %49 = vector.load %arg9[%c0_30, %c0_31] : memref<8x16xbf16, #tpu.memory_space<vmem>>, vector<8x16xbf16>
      %cst_32 = arith.constant dense<0.000000e+00> : vector<128x16xf32>
      %50 = tpu.matmul %48, %49, %cst_32 {dimension_numbers = #tpu.dot_dimension_numbers<[1], [0], [0], [1], [0, 0, 1, 1], [], []>} : vector<128x8xbf16>, vector<8x16xbf16>, vector<128x16xf32> -> vector<128x16xf32>
      %c0_33 = arith.constant 0 : index
      %c0_34 = arith.constant 0 : index
      %c0_35 = arith.constant 0 : index
      %51 = vector.load %arg3[%c0_33, %c0_34, %c0_35] : memref<1x128x16xbf16, #tpu.memory_space<vmem>>, vector<1x128x16xbf16>
      %52 = vector.shape_cast %51 : vector<1x128x16xbf16> to vector<128x16xbf16>
      %c0_36 = arith.constant 0 : index
      %c0_37 = arith.constant 0 : index
      %53 = vector.load %arg10[%c0_36, %c0_37] : memref<16x16xbf16, #tpu.memory_space<vmem>>, vector<16x16xbf16>
      %cst_38 = arith.constant dense<0.000000e+00> : vector<128x16xf32>
      %54 = tpu.matmul %52, %53, %cst_38 {dimension_numbers = #tpu.dot_dimension_numbers<[1], [0], [0], [1], [0, 0, 1, 1], [], []>} : vector<128x16xbf16>, vector<16x16xbf16>, vector<128x16xf32> -> vector<128x16xf32>
      %55 = arith.addf %50, %54 : vector<128x16xf32>
      %c0_39 = arith.constant 0 : index
      %c0_40 = arith.constant 0 : index
      %56 = vector.load %arg11[%c0_39, %c0_40] : memref<1x16xf32, #tpu.memory_space<vmem>>, vector<1x16xf32>
      %57 = vector.broadcast %56 : vector<1x16xf32> to vector<128x16xf32>
      %58 = arith.addf %55, %57 : vector<128x16xf32>
      %c0_41 = arith.constant 0 : index
      %c0_42 = arith.constant 0 : index
      %c0_43 = arith.constant 0 : index
      %59 = vector.load %arg12[%c0_41, %c0_42, %c0_43] : memref<1x128x16xf32, #tpu.memory_space<vmem>>, vector<1x128x16xf32>
      %60 = vector.shape_cast %59 : vector<1x128x16xf32> to vector<128x16xf32>
      %61 = vector.shape_cast %58 : vector<128x16xf32> to vector<1x128x16xf32>
      tpu.vector_store %arg12[%c0_41, %c0_42, %c0_43], %61 {strides = array<i32>} : memref<1x128x16xf32, #tpu.memory_space<vmem>>, vector<1x128x16xf32>,
    } else {
    }
    return
  }
  func.func @transform_0(%arg0: i32, %arg1: i32, %arg2: i32) -> (i32, i32, i32) {
    %c0_i32 = arith.constant 0 : i32
    %c0_i32_0 = arith.constant 0 : i32
    return %arg0, %arg1, %c0_i32 : i32, i32, i32
  }
  func.func @transform_1(%arg0: i32, %arg1: i32, %arg2: i32) -> (i32, i32, i32) {
    %c0_i32 = arith.constant 0 : i32
    %c0_i32_0 = arith.constant 0 : i32
    return %arg0, %arg2, %c0_i32 : i32, i32, i32
  }
  func.func @transform_2(%arg0: i32, %arg1: i32, %arg2: i32) -> (i32, i32) {
    %c0_i32 = arith.constant 0 : i32
    %c0_i32_0 = arith.constant 0 : i32
    %c0_i32_1 = arith.constant 0 : i32
    return %c0_i32, %c0_i32_0 : i32, i32
  }
  func.func @transform_3(%arg0: i32, %arg1: i32, %arg2: i32) -> (i32, i32) {
    %c0_i32 = arith.constant 0 : i32
    %c0_i32_0 = arith.constant 0 : i32
    %c0_i32_1 = arith.constant 0 : i32
    return %c0_i32, %c0_i32_0 : i32, i32
  }
  func.func @transform_4(%arg0: i32, %arg1: i32, %arg2: i32) -> (i32, i32) {
    %c0_i32 = arith.constant 0 : i32
    %c0_i32_0 = arith.constant 0 : i32
    %c0_i32_1 = arith.constant 0 : i32
    return %c0_i32, %c0_i32_0 : i32, i32
  }
  func.func @transform_5(%arg0: i32, %arg1: i32, %arg2: i32) -> (i32, i32) {
    %c0_i32 = arith.constant 0 : i32
    %c0_i32_0 = arith.constant 0 : i32
    %c0_i32_1 = arith.constant 0 : i32
    return %c0_i32, %c0_i32_0 : i32, i32
  }
  func.func @transform_6(%arg0: i32, %arg1: i32, %arg2: i32) -> (i32, i32) {
    %c0_i32 = arith.constant 0 : i32
    %c0_i32_0 = arith.constant 0 : i32
    %c0_i32_1 = arith.constant 0 : i32
    return %c0_i32, %c0_i32_0 : i32, i32
  }
  func.func @transform_7(%arg0: i32, %arg1: i32, %arg2: i32) -> (i32, i32) {
    %c0_i32 = arith.constant 0 : i32
    %c0_i32_0 = arith.constant 0 : i32
    %c0_i32_1 = arith.constant 0 : i32
    return %c0_i32, %c0_i32_0 : i32, i32
  }
  func.func @transform_8(%arg0: i32, %arg1: i32, %arg2: i32) -> (i32, i32) {
    %c0_i32 = arith.constant 0 : i32
    %c0_i32_0 = arith.constant 0 : i32
    %c0_i32_1 = arith.constant 0 : i32
    return %c0_i32, %c0_i32_0 : i32, i32
  }
  func.func @transform_9(%arg0: i32, %arg1: i32, %arg2: i32) -> (i32, i32, i32) {
    %c0_i32 = arith.constant 0 : i32
    %c0_i32_0 = arith.constant 0 : i32
    return %arg0, %arg1, %c0_i32 : i32, i32, i32
  }
}

</mosaic_0001>

<llo_original>
// kernel: tpu_custom_call.1
$region0: #{tpu_custom_call.1}
  #allocation0 [shape = 'u32[]', space=smem, size = 0x4, offset = 0x4, fixed_abs, tag = 'smem constant byte address 0x4 - core index']
  #allocation1 [shape = 'u32[144,128]{1,0:T(1,128)}', space=vmem, size = 0x12000, scoped, tag = 'internal scratch']
  #allocation2 [shape = 'f32[128,1]{1,0:T(8,128)}', space=vmem, size = 0x10000, scoped, tag = 'scratch operand']
  #allocation3 [shape = 'f32[128,1]{1,0:T(8,128)}', space=vmem, size = 0x10000, scoped, tag = 'scratch operand']
  #allocation4 [shape = 'f32[128,8]{1,0:T(8,128)}', space=vmem, size = 0x10000, scoped, tag = 'scratch operand']
  #allocation5 [shape = 'bf16[128,8]{1,0:T(16,128)(2,1)}', space=vmem, size = 0x8000, scoped, tag = 'scratch operand']
  %s0 = inlined_call_operand.vmem [shape: bf16[2,256,16], index: 0, kind: input, shape index: {}]
  %s1 = inlined_call_operand.vmem [shape: bf16[2,256,16], index: 1, kind: input, shape index: {}]
  %s2 = inlined_call_operand.vmem [shape: bf16[16,8], index: 2, kind: input, shape index: {}]
  %s3 = inlined_call_operand.vmem [shape: f32[1,8], index: 3, kind: input, shape index: {}]
  %s4 = inlined_call_operand.vmem [shape: bf16[16,16], index: 4, kind: input, shape index: {}]
  %s5 = inlined_call_operand.vmem [shape: f32[1,16], index: 5, kind: input, shape index: {}]
  %s6 = inlined_call_operand.vmem [shape: bf16[8,16], index: 6, kind: input, shape index: {}]
  %s7 = inlined_call_operand.vmem [shape: bf16[16,16], index: 7, kind: input, shape index: {}]
  %s8 = inlined_call_operand.vmem [shape: f32[1,16], index: 8, kind: input, shape index: {}]
  %s9 = inlined_call_operand.vmem [shape: f32[2,256,16], index: 9, kind: output, shape index: {}]
  %s10 = sld [smem:[#allocation0]]
  $region77: #{tpu_custom_call.1} parent=0
    _
  %s12 = ssub.s32 1, %s10
  %s13 = scalar_select 0, %s12, %s10
  loop: start=0, step=1, limit=10
  $region2: #{tpu_custom_call.1} parent=0 // loop_pre_header
    _
  $region3: #{tpu_custom_call.1} parent=0 // loop_header
    %s15 = sphi 0, %s19
    %p16 = scmp.ge.s32.totalorder %s15, 10
    %s22 = sphi 0, %s41
    %s23 = sphi 0, %s37
    %s24 = sphi 0, %s33
    %s25 = sphi 0, %s22
    %s26 = sphi 0, %s23
    %s27 = sphi 0, %s24
    %s28 = sphi 0, %s25
    %s29 = sphi 0, %s26
    %s30 = sphi 0, %s27
    %s46 = sphi 0, %s48
    %s49 = sphi 0, %s46
    %s50 = sphi 0, %s49
    %s66 = sphi 0, %s50
    %s74 = sphi 0, %s76
    %s77 = sphi 0, %s74
    %s78 = sphi 0, %s77
    %s94 = sphi 0, %s78
    %s98 = sphi 0, %s98
    %s100 = sphi 0, %s98
    %s101 = sphi 0, %s100
    %s115 = sphi 0, %s101
    %s119 = sphi 0, %s119
    %s121 = sphi 0, %s119
    %s122 = sphi 0, %s121
    %s136 = sphi 0, %s122
    %s140 = sphi 0, %s140
    %s142 = sphi 0, %s140
    %s143 = sphi 0, %s142
    %s157 = sphi 0, %s143
    %s161 = sphi 0, %s161
    %s163 = sphi 0, %s161
    %s164 = sphi 0, %s163
    %s178 = sphi 0, %s164
    %s182 = sphi 0, %s182
    %s184 = sphi 0, %s182
    %s185 = sphi 0, %s184
    %s199 = sphi 0, %s185
    %s203 = sphi 0, %s203
    %s205 = sphi 0, %s203
    %s206 = sphi 0, %s205
    %s220 = sphi 0, %s206
    %s224 = sphi 0, %s224
    %s226 = sphi 0, %s224
    %s227 = sphi 0, %s226
    %s241 = sphi 0, %s227
    %s249 = sphi 0, %s251
    %s252 = sphi 0, %s249
    %s253 = sphi 0, %s252
    %s269 = sphi 0, %s253
  $region4: #{tpu_custom_call.1} parent=0 // loop_header_branch
    %18 = sbr.rel (%p16) target = $region8
  $region5: #{tpu_custom_call.1} parent=0 // loop_body
    %s20 = ssub.s32 %s15, 1
    %s21 = ssub.s32 %s15, 2
    %s31 = sadd.s32 1, %s24
    %p32 = scmp.ge.s32.totalorder %s31, 2
    %s33 = scalar_select %p32, 0, %s31
    %s34 = sadd.s32 1, %s23
    %s35 = scalar_select %p32, %s34, %s23
    %p36 = scmp.ge.s32.totalorder %s35, 2
    %s37 = scalar_select %p36, 0, %s35
    %s38 = sadd.s32 1, %s22
    %s39 = scalar_select %p36, %s38, %s22
    %p40 = scmp.ge.s32.totalorder %s39, 2
    %s41 = scalar_select %p40, 0, %s39
    %s42 = ssub.s32 %s22, %s41
    %s43 = ssub.s32 %s23, %s37
    %s44 = sor.u32 %s42, %s43
    %p45 = scmp.eq.s32.totalorder %s44, 0
    %s47 = sadd.s32 %s46, 1
    %s48 = scalar_select %p45, %s46, %s47
    %p51 = pneg %p45
    %p52 = scmp.eq.s32.totalorder %s15, 7
    %p53 = por %p51, %p52
    %p54 = scmp.ne.s32.totalorder %s46, %s49
    %p55 = scmp.eq.s32.totalorder %s15, 0
    %p56 = por %p54, %p55
    %p57 = scmp.ne.s32.totalorder %s46, %s49
    %p58 = scmp.eq.s32.totalorder %s20, 7
    %p59 = por %p57, %p58
    %p60 = scmp.ne.s32.totalorder %s49, %s50
    %p61 = scmp.eq.s32.totalorder %s20, 0
    %p62 = por %p60, %p61
    %p63 = scmp.ne.s32.totalorder %s49, %s50
    %p64 = scmp.eq.s32.totalorder %s21, 7
    %p65 = por %p63, %p64
    %p67 = scmp.ne.s32.totalorder %s50, %s66
    %p68 = scmp.eq.s32.totalorder %s21, 0
    %p69 = por %p67, %p68
    %s70 = ssub.s32 %s22, %s41
    %s71 = ssub.s32 %s24, %s33
    %s72 = sor.u32 %s70, %s71
    %p73 = scmp.eq.s32.totalorder %s72, 0
    %s75 = sadd.s32 %s74, 1
    %s76 = scalar_select %p73, %s74, %s75
    %p79 = pneg %p73
    %p80 = scmp.eq.s32.totalorder %s15, 7
    %p81 = por %p79, %p80
    %p82 = scmp.ne.s32.totalorder %s74, %s77
    %p83 = scmp.eq.s32.totalorder %s15, 0
    %p84 = por %p82, %p83
    %p85 = scmp.ne.s32.totalorder %s74, %s77
    %p86 = scmp.eq.s32.totalorder %s20, 7
    %p87 = por %p85, %p86
    %p88 = scmp.ne.s32.totalorder %s77, %s78
    %p89 = scmp.eq.s32.totalorder %s20, 0
    %p90 = por %p88, %p89
    %p91 = scmp.ne.s32.totalorder %s77, %s78
    %p92 = scmp.eq.s32.totalorder %s21, 7
    %p93 = por %p91, %p92
    %p95 = scmp.ne.s32.totalorder %s78, %s94
    %p96 = scmp.eq.s32.totalorder %s21, 0
    %p97 = por %p95, %p96
    %s99 = sadd.s32 %s98, 1
    %p102 = scmp.eq.s32.totalorder %s15, 7
    %p103 = scmp.ne.s32.totalorder %s98, %s100
    %p104 = scmp.eq.s32.totalorder %s15, 0
    %p105 = por %p103, %p104
    %p106 = scmp.ne.s32.totalorder %s98, %s100
    %p107 = scmp.eq.s32.totalorder %s20, 7
    %p108 = por %p106, %p107
    %p109 = scmp.ne.s32.totalorder %s100, %s101
    %p110 = scmp.eq.s32.totalorder %s20, 0
    %p111 = por %p109, %p110
    %p112 = scmp.ne.s32.totalorder %s100, %s101
    %p113 = scmp.eq.s32.totalorder %s21, 7
    %p114 = por %p112, %p113
    %p116 = scmp.ne.s32.totalorder %s101, %s115
    %p117 = scmp.eq.s32.totalorder %s21, 0
    %p118 = por %p116, %p117
    %s120 = sadd.s32 %s119, 1
    %p123 = scmp.eq.s32.totalorder %s15, 7
    %p124 = scmp.ne.s32.totalorder %s119, %s121
    %p125 = scmp.eq.s32.totalorder %s15, 0
    %p126 = por %p124, %p125
    %p127 = scmp.ne.s32.totalorder %s119, %s121
    %p128 = scmp.eq.s32.totalorder %s20, 7
    %p129 = por %p127, %p128
    %p130 = scmp.ne.s32.totalorder %s121, %s122
    %p131 = scmp.eq.s32.totalorder %s20, 0
    %p132 = por %p130, %p131
    %p133 = scmp.ne.s32.totalorder %s121, %s122
    %p134 = scmp.eq.s32.totalorder %s21, 7
    %p135 = por %p133, %p134
    %p137 = scmp.ne.s32.totalorder %s122, %s136
    %p138 = scmp.eq.s32.totalorder %s21, 0
    %p139 = por %p137, %p138
    %s141 = sadd.s32 %s140, 1
    %p144 = scmp.eq.s32.totalorder %s15, 7
    %p145 = scmp.ne.s32.totalorder %s140, %s142
    %p146 = scmp.eq.s32.totalorder %s15, 0
    %p147 = por %p145, %p146
    %p148 = scmp.ne.s32.totalorder %s140, %s142
    %p149 = scmp.eq.s32.totalorder %s20, 7
    %p150 = por %p148, %p149
    %p151 = scmp.ne.s32.totalorder %s142, %s143
    %p152 = scmp.eq.s32.totalorder %s20, 0
    %p153 = por %p151, %p152
    %p154 = scmp.ne.s32.totalorder %s142, %s143
    %p155 = scmp.eq.s32.totalorder %s21, 7
    %p156 = por %p154, %p155
    %p158 = scmp.ne.s32.totalorder %s143, %s157
    %p159 = scmp.eq.s32.totalorder %s21, 0
    %p160 = por %p158, %p159
    %s162 = sadd.s32 %s161, 1
    %p165 = scmp.eq.s32.totalorder %s15, 7
    %p166 = scmp.ne.s32.totalorder %s161, %s163
    %p167 = scmp.eq.s32.totalorder %s15, 0
    %p168 = por %p166, %p167
    %p169 = scmp.ne.s32.totalorder %s161, %s163
    %p170 = scmp.eq.s32.totalorder %s20, 7
    %p171 = por %p169, %p170
    %p172 = scmp.ne.s32.totalorder %s163, %s164
    %p173 = scmp.eq.s32.totalorder %s20, 0
    %p174 = por %p172, %p173
    %p175 = scmp.ne.s32.totalorder %s163, %s164
    %p176 = scmp.eq.s32.totalorder %s21, 7
    %p177 = por %p175, %p176
    %p179 = scmp.ne.s32.totalorder %s164, %s178
    %p180 = scmp.eq.s32.totalorder %s21, 0
    %p181 = por %p179, %p180
    %s183 = sadd.s32 %s182, 1
    %p186 = scmp.eq.s32.totalorder %s15, 7
    %p187 = scmp.ne.s32.totalorder %s182, %s184
    %p188 = scmp.eq.s32.totalorder %s15, 0
    %p189 = por %p187, %p188
    %p190 = scmp.ne.s32.totalorder %s182, %s184
    %p191 = scmp.eq.s32.totalorder %s20, 7
    %p192 = por %p190, %p191
    %p193 = scmp.ne.s32.totalorder %s184, %s185
    %p194 = scmp.eq.s32.totalorder %s20, 0
    %p195 = por %p193, %p194
    %p196 = scmp.ne.s32.totalorder %s184, %s185
    %p197 = scmp.eq.s32.totalorder %s21, 7
    %p198 = por %p196, %p197
    %p200 = scmp.ne.s32.totalorder %s185, %s199
    %p201 = scmp.eq.s32.totalorder %s21, 0
    %p202 = por %p200, %p201
    %s204 = sadd.s32 %s203, 1
    %p207 = scmp.eq.s32.totalorder %s15, 7
    %p208 = scmp.ne.s32.totalorder %s203, %s205
    %p209 = scmp.eq.s32.totalorder %s15, 0
    %p210 = por %p208, %p209
    %p211 = scmp.ne.s32.totalorder %s203, %s205
    %p212 = scmp.eq.s32.totalorder %s20, 7
    %p213 = por %p211, %p212
    %p214 = scmp.ne.s32.totalorder %s205, %s206
    %p215 = scmp.eq.s32.totalorder %s20, 0
    %p216 = por %p214, %p215
    %p217 = scmp.ne.s32.totalorder %s205, %s206
    %p218 = scmp.eq.s32.totalorder %s21, 7
    %p219 = por %p217, %p218
    %p221 = scmp.ne.s32.totalorder %s206, %s220
    %p222 = scmp.eq.s32.totalorder %s21, 0
    %p223 = por %p221, %p222
    %s225 = sadd.s32 %s224, 1
    %p228 = scmp.eq.s32.totalorder %s15, 7
    %p229 = scmp.ne.s32.totalorder %s224, %s226
    %p230 = scmp.eq.s32.totalorder %s15, 0
    %p231 = por %p229, %p230
    %p232 = scmp.ne.s32.totalorder %s224, %s226
    %p233 = scmp.eq.s32.totalorder %s20, 7
    %p234 = por %p232, %p233
    %p235 = scmp.ne.s32.totalorder %s226, %s227
    %p236 = scmp.eq.s32.totalorder %s20, 0
    %p237 = por %p235, %p236
    %p238 = scmp.ne.s32.totalorder %s226, %s227
    %p239 = scmp.eq.s32.totalorder %s21, 7
    %p240 = por %p238, %p239
    %p242 = scmp.ne.s32.totalorder %s227, %s241
    %p243 = scmp.eq.s32.totalorder %s21, 0
    %p244 = por %p242, %p243
    %s245 = ssub.s32 %s22, %s41
    %s246 = ssub.s32 %s23, %s37
    %s247 = sor.u32 %s245, %s246
    %p248 = scmp.eq.s32.totalorder %s247, 0
    %s250 = sadd.s32 %s249, 1
    %s251 = scalar_select %p248, %s249, %s250
    %p254 = pneg %p248
    %p255 = scmp.eq.s32.totalorder %s15, 7
    %p256 = por %p254, %p255
    %p257 = scmp.ne.s32.totalorder %s249, %s252
    %p258 = scmp.eq.s32.totalorder %s15, 0
    %p259 = por %p257, %p258
    %p260 = scmp.ne.s32.totalorder %s249, %s252
    %p261 = scmp.eq.s32.totalorder %s20, 7
    %p262 = por %p260, %p261
    %p263 = scmp.ne.s32.totalorder %s252, %s253
    %p264 = scmp.eq.s32.totalorder %s20, 0
    %p265 = por %p263, %p264
    %p266 = scmp.ne.s32.totalorder %s252, %s253
    %p267 = scmp.eq.s32.totalorder %s21, 7
    %p268 = por %p266, %p267
    %p270 = scmp.ne.s32.totalorder %s253, %s269
    %p271 = scmp.eq.s32.totalorder %s21, 0
    %p272 = por %p270, %p271
    %p273 = scmp.le.s32.totalorder 1, %s15
    %p274 = scmp.lt.s32.totalorder %s15, 9
    %p275 = pnand %p273, %p274
    %p276 = pneg %p275
    // Predicated region
    $region9: #{tpu_custom_call.1} parent=5 // pred_check
      _
    $region10: #{tpu_custom_call.1} parent=5 // pred_check_branch
      %278 = sbr.rel (%p275) target = $region12
    $region11: #{tpu_custom_call.1} parent=5 // pred_region
      %s279 = ssub.s32 %s15, 1
      // Predicated region
      $region13: #{tpu_custom_call.1} parent=11 // pred_check
        %p280 = pneg %p111
      $region14: #{tpu_custom_call.1} parent=11 // pred_check_branch
        %282 = sbr.rel (%p280) target = $region16
      $region15: #{tpu_custom_call.1} parent=11 // pred_region
        _
      $region16: #{tpu_custom_call.1} parent=11 // pred_fallthru
        _
      // Predicated region
      $region17: #{tpu_custom_call.1} parent=11 // pred_check
        %p283 = pneg %p132
      $region18: #{tpu_custom_call.1} parent=11 // pred_check_branch
        %285 = sbr.rel (%p283) target = $region20
      $region19: #{tpu_custom_call.1} parent=11 // pred_region
        _
      $region20: #{tpu_custom_call.1} parent=11 // pred_fallthru
        _
      // Predicated region
      $region21: #{tpu_custom_call.1} parent=11 // pred_check
        %p286 = pneg %p153
      $region22: #{tpu_custom_call.1} parent=11 // pred_check_branch
        %288 = sbr.rel (%p286) target = $region24
      $region23: #{tpu_custom_call.1} parent=11 // pred_region
        _
      $region24: #{tpu_custom_call.1} parent=11 // pred_fallthru
        _
      // Predicated region
      $region25: #{tpu_custom_call.1} parent=11 // pred_check
        %p289 = pneg %p174
      $region26: #{tpu_custom_call.1} parent=11 // pred_check_branch
        %291 = sbr.rel (%p289) target = $region28
      $region27: #{tpu_custom_call.1} parent=11 // pred_region
        _
      $region28: #{tpu_custom_call.1} parent=11 // pred_fallthru
        _
      // Predicated region
      $region29: #{tpu_custom_call.1} parent=11 // pred_check
        %p292 = pneg %p195
      $region30: #{tpu_custom_call.1} parent=11 // pred_check_branch
        %294 = sbr.rel (%p292) target = $region32
      $region31: #{tpu_custom_call.1} parent=11 // pred_region
        _
      $region32: #{tpu_custom_call.1} parent=11 // pred_fallthru
        _
      // Predicated region
      $region33: #{tpu_custom_call.1} parent=11 // pred_check
        %p295 = pneg %p216
      $region34: #{tpu_custom_call.1} parent=11 // pred_check_branch
        %297 = sbr.rel (%p295) target = $region36
      $region35: #{tpu_custom_call.1} parent=11 // pred_region
        _
      $region36: #{tpu_custom_call.1} parent=11 // pred_fallthru
        _
      // Predicated region
      $region37: #{tpu_custom_call.1} parent=11 // pred_check
        %p298 = pneg %p237
      $region38: #{tpu_custom_call.1} parent=11 // pred_check_branch
        %300 = sbr.rel (%p298) target = $region40
      $region39: #{tpu_custom_call.1} parent=11 // pred_region
        _
      $region40: #{tpu_custom_call.1} parent=11 // pred_fallthru
        _
    $region12: #{tpu_custom_call.1} parent=5 // pred_fallthru
      _
    %p301 = scmp.lt.s32.totalorder %s15, 8
    // Predicated region
    $region41: #{tpu_custom_call.1} parent=5 // pred_check
      %p302 = pneg %p301
    $region42: #{tpu_custom_call.1} parent=5 // pred_check_branch
      %304 = sbr.rel (%p302) target = $region44
    $region43: #{tpu_custom_call.1} parent=5 // pred_region
      // Predicated region
      $region45: #{tpu_custom_call.1} parent=43 // pred_check
        %p305 = pneg %p56
      $region46: #{tpu_custom_call.1} parent=43 // pred_check_branch
        %307 = sbr.rel (%p305) target = $region48
      $region47: #{tpu_custom_call.1} parent=43 // pred_region
        %s308 = smul.u32 16, %s23
        %p309 = scmp.lt.s32.totalorder %s22, 1
        %s310 = scalar_select %p309, %s22, 1
        %p311 = scmp.lt.s32.totalorder %s308, 31
        %s312 = scalar_select %p311, %s308, 31
        %s313 = smul.addr %s310, 32
        %s314 = sadd.s32 %s312, %s313
        %s315 = smul.addr %s314, 4
        %s316 = scalar_lea.vmem %s0, %s315
        %s317 = smul.u32 16, %s23
      $region48: #{tpu_custom_call.1} parent=43 // pred_fallthru
        _
      // Predicated region
      $region49: #{tpu_custom_call.1} parent=43 // pred_check
        %p318 = pneg %p84
      $region50: #{tpu_custom_call.1} parent=43 // pred_check_branch
        %320 = sbr.rel (%p318) target = $region52
      $region51: #{tpu_custom_call.1} parent=43 // pred_region
        %s321 = smul.u32 16, %s24
        %p322 = scmp.lt.s32.totalorder %s22, 1
        %s323 = scalar_select %p322, %s22, 1
        %p324 = scmp.lt.s32.totalorder %s321, 31
        %s325 = scalar_select %p324, %s321, 31
        %s326 = smul.addr %s323, 32
        %s327 = sadd.s32 %s325, %s326
        %s328 = smul.addr %s327, 4
        %s329 = scalar_lea.vmem %s1, %s328
        %s330 = smul.u32 16, %s24
      $region52: #{tpu_custom_call.1} parent=43 // pred_fallthru
        _
    $region44: #{tpu_custom_call.1} parent=5 // pred_fallthru
      _
    %p331 = scmp.le.s32.totalorder 1, %s15
    %p332 = scmp.lt.s32.totalorder %s15, 9
    %p333 = pnand %p331, %p332
    %p334 = pneg %p333
    // Predicated region
    $region53: #{tpu_custom_call.1} parent=5 // pred_check
      _
    $region54: #{tpu_custom_call.1} parent=5 // pred_check_branch
      %336 = sbr.rel (%p333) target = $region56
    $region55: #{tpu_custom_call.1} parent=5 // pred_region
      %s337 = ssub.s32 %s15, 1
      %s338 = smul.u32 16, %s26
      %p339 = scmp.lt.s32.totalorder %s25, 1
      %s340 = scalar_select %p339, %s25, 1
      %p341 = scmp.lt.s32.totalorder %s338, 31
      %s342 = scalar_select %p341, %s338, 31
      %s343 = smul.addr %s340, 32
      %s344 = sadd.s32 %s342, %s343
      %s345 = smul.addr %s344, 4
      %s346 = scalar_lea.vmem %s0, %s345
      %p347 = pneg %p62
      %p348 = pneg %p59
      %s349 = smul.u32 16, %s27
      %p350 = scmp.lt.s32.totalorder %s25, 1
      %s351 = scalar_select %p350, %s25, 1
      %p352 = scmp.lt.s32.totalorder %s349, 31
      %s353 = scalar_select %p352, %s349, 31
      %s354 = smul.addr %s351, 32
      %s355 = sadd.s32 %s353, %s354
      %s356 = smul.addr %s355, 4
      %s357 = scalar_lea.vmem %s1, %s356
      %p358 = pneg %p90
      %p359 = pneg %p87
      %p360 = pneg %p111
      %p361 = pneg %p108
      %p362 = pneg %p132
      %p363 = pneg %p129
      %p364 = pneg %p153
      %p365 = pneg %p150
      %p366 = pneg %p174
      %p367 = pneg %p171
      %p368 = pneg %p195
      %p369 = pneg %p192
      %p370 = pneg %p216
      %p371 = pneg %p213
      %p372 = pneg %p237
      %p373 = pneg %p234
      %p374 = pneg %p265
      %p375 = pneg %p262
      %s376 = smul.u32 16, %s26
      %p377 = scmp.lt.s32.totalorder %s25, 1
      %s378 = scalar_select %p377, %s25, 1
      %p379 = scmp.lt.s32.totalorder %s376, 31
      %s380 = scalar_select %p379, %s376, 31
      %s381 = smul.addr %s378, 32
      %s382 = sadd.s32 %s380, %s381
      %s383 = smul.addr %s382, 8
      %s384 = scalar_lea.vmem %s9, %s383
      %s385 = smul.u32 16, %s26
      %p386 = scmp.lt.s32.totalorder %s25, 1
      %s387 = scalar_select %p386, %s25, 1
      %p388 = scmp.lt.s32.totalorder %s385, 31
      %s389 = scalar_select %p388, %s385, 31
      %s390 = smul.addr %s387, 32
      %s391 = sadd.s32 %s389, %s390
      %s392 = smul.addr %s391, 4
      %s393 = scalar_lea.vmem %s0, %s392
      %s394 = smul.u32 16, %s26
      %s395 = smul.u32 16, %s27
      %p396 = scmp.lt.s32.totalorder %s25, 1
      %s397 = scalar_select %p396, %s25, 1
      %p398 = scmp.lt.s32.totalorder %s395, 31
      %s399 = scalar_select %p398, %s395, 31
      %s400 = smul.addr %s397, 32
      %s401 = sadd.s32 %s399, %s400
      %s402 = smul.addr %s401, 4
      %s403 = scalar_lea.vmem %s1, %s402
      %s404 = smul.u32 16, %s27
      %s405 = smul.u32 16, %s26
      %p406 = scmp.lt.s32.totalorder %s25, 1
      %s407 = scalar_select %p406, %s25, 1
      %p408 = scmp.lt.s32.totalorder %s405, 31
      %s409 = scalar_select %p408, %s405, 31
      %s410 = smul.addr %s407, 32
      %s411 = sadd.s32 %s409, %s410
      %s412 = smul.addr %s411, 8
      %s413 = scalar_lea.vmem %s9, %s412
      %s414 = smul.u32 16, %s26
      %p416 = scmp.eq.s32.totalorder %s27, 0
      // Predicated region
      $region57: #{tpu_custom_call.1} parent=55 // pred_check
        %p417 = pneg %p416
      $region58: #{tpu_custom_call.1} parent=55 // pred_check_branch
        %419 = sbr.rel (%p417) target = $region60
      $region59: #{tpu_custom_call.1} parent=55 // pred_region
        %vm420 = vcmask 7168
        %421 = vst.msk [vmem:[#allocation2] sm:$0xff] %vm420, -inf
        %422 = vst.msk [vmem:[#allocation2 + $0x8] sm:$0xff] %vm420, -inf
        %423 = vst.msk [vmem:[#allocation2 + $0x10] sm:$0xff] %vm420, -inf
        %424 = vst.msk [vmem:[#allocation2 + $0x18] sm:$0xff] %vm420, -inf
        %425 = vst.msk [vmem:[#allocation2 + $0x20] sm:$0xff] %vm420, -inf
        %426 = vst.msk [vmem:[#allocation2 + $0x28] sm:$0xff] %vm420, -inf
        %427 = vst.msk [vmem:[#allocation2 + $0x30] sm:$0xff] %vm420, -inf
        %428 = vst.msk [vmem:[#allocation2 + $0x38] sm:$0xff] %vm420, -inf
        %429 = vst.msk [vmem:[#allocation2 + $0x40] sm:$0xff] %vm420, -inf
        %430 = vst.msk [vmem:[#allocation2 + $0x48] sm:$0xff] %vm420, -inf
        %431 = vst.msk [vmem:[#allocation2 + $0x50] sm:$0xff] %vm420, -inf
        %432 = vst.msk [vmem:[#allocation2 + $0x58] sm:$0xff] %vm420, -inf
        %433 = vst.msk [vmem:[#allocation2 + $0x60] sm:$0xff] %vm420, -inf
        %434 = vst.msk [vmem:[#allocation2 + $0x68] sm:$0xff] %vm420, -inf
        %435 = vst.msk [vmem:[#allocation2 + $0x70] sm:$0xff] %vm420, -inf
        %436 = vst.msk [vmem:[#allocation2 + $0x78] sm:$0xff] %vm420, -inf
        %437 = vst.msk [vmem:[#allocation3] sm:$0xff] %vm420, 0.0
        %438 = vst.msk [vmem:[#allocation3 + $0x8] sm:$0xff] %vm420, 0.0
        %439 = vst.msk [vmem:[#allocation3 + $0x10] sm:$0xff] %vm420, 0.0
        %440 = vst.msk [vmem:[#allocation3 + $0x18] sm:$0xff] %vm420, 0.0
        %441 = vst.msk [vmem:[#allocation3 + $0x20] sm:$0xff] %vm420, 0.0
        %442 = vst.msk [vmem:[#allocation3 + $0x28] sm:$0xff] %vm420, 0.0
        %443 = vst.msk [vmem:[#allocation3 + $0x30] sm:$0xff] %vm420, 0.0
        %444 = vst.msk [vmem:[#allocation3 + $0x38] sm:$0xff] %vm420, 0.0
        %445 = vst.msk [vmem:[#allocation3 + $0x40] sm:$0xff] %vm420, 0.0
        %446 = vst.msk [vmem:[#allocation3 + $0x48] sm:$0xff] %vm420, 0.0
        %447 = vst.msk [vmem:[#allocation3 + $0x50] sm:$0xff] %vm420, 0.0
        %448 = vst.msk [vmem:[#allocation3 + $0x58] sm:$0xff] %vm420, 0.0
        %449 = vst.msk [vmem:[#allocation3 + $0x60] sm:$0xff] %vm420, 0.0
        %450 = vst.msk [vmem:[#allocation3 + $0x68] sm:$0xff] %vm420, 0.0
        %451 = vst.msk [vmem:[#allocation3 + $0x70] sm:$0xff] %vm420, 0.0
        %452 = vst.msk [vmem:[#allocation3 + $0x78] sm:$0xff] %vm420, 0.0
        %vm453 = vcmask 64512
        %454 = vst.msk [vmem:[#allocation4] sm:$0xff] %vm453, 0.0
        %455 = vst.msk [vmem:[#allocation4 + $0x8] sm:$0xff] %vm453, 0.0
        %456 = vst.msk [vmem:[#allocation4 + $0x10] sm:$0xff] %vm453, 0.0
        %457 = vst.msk [vmem:[#allocation4 + $0x18] sm:$0xff] %vm453, 0.0
        %458 = vst.msk [vmem:[#allocation4 + $0x20] sm:$0xff] %vm453, 0.0
        %459 = vst.msk [vmem:[#allocation4 + $0x28] sm:$0xff] %vm453, 0.0
        %460 = vst.msk [vmem:[#allocation4 + $0x30] sm:$0xff] %vm453, 0.0
        %461 = vst.msk [vmem:[#allocation4 + $0x38] sm:$0xff] %vm453, 0.0
        %462 = vst.msk [vmem:[#allocation4 + $0x40] sm:$0xff] %vm453, 0.0
        %463 = vst.msk [vmem:[#allocation4 + $0x48] sm:$0xff] %vm453, 0.0
        %464 = vst.msk [vmem:[#allocation4 + $0x50] sm:$0xff] %vm453, 0.0
        %465 = vst.msk [vmem:[#allocation4 + $0x58] sm:$0xff] %vm453, 0.0
        %466 = vst.msk [vmem:[#allocation4 + $0x60] sm:$0xff] %vm453, 0.0
        %467 = vst.msk [vmem:[#allocation4 + $0x68] sm:$0xff] %vm453, 0.0
        %468 = vst.msk [vmem:[#allocation4 + $0x70] sm:$0xff] %vm453, 0.0
        %469 = vst.msk [vmem:[#allocation4 + $0x78] sm:$0xff] %vm453, 0.0
        %v470 = vld [vmem:[%s393] sm:$0xf]
        %v471 = vld [vmem:[%s393 + $0x4] sm:$0xf]
        %v472 = vld [vmem:[%s393 + $0x8] sm:$0xf]
        %v473 = vld [vmem:[%s393 + $0xc] sm:$0xf]
        %v474 = vld [vmem:[%s393 + $0x10] sm:$0xf]
        %v475 = vld [vmem:[%s393 + $0x14] sm:$0xf]
        %v476 = vld [vmem:[%s393 + $0x18] sm:$0xf]
        %v477 = vld [vmem:[%s393 + $0x1c] sm:$0xf]
        %v478 = vld [vmem:[%s393 + $0x20] sm:$0xf]
        %v479 = vld [vmem:[%s393 + $0x24] sm:$0xf]
        %v480 = vld [vmem:[%s393 + $0x28] sm:$0xf]
        %v481 = vld [vmem:[%s393 + $0x2c] sm:$0xf]
        %v482 = vld [vmem:[%s393 + $0x30] sm:$0xf]
        %v483 = vld [vmem:[%s393 + $0x34] sm:$0xf]
        %v484 = vld [vmem:[%s393 + $0x38] sm:$0xf]
        %v485 = vld [vmem:[%s393 + $0x3c] sm:$0xf]
        %v486 = vld [vmem:[%s2] sm:$0xf]
        %v487 = vld [vmem:[%s2 + $0x4] sm:$0xf]
        %v488 = vld [vmem:[%s3] sm:$0x1]
        %v490 = vlaneseq
        %v491 = vshrl.u32 %v490, 7
        %v492 = vsub.s32 0, %v491
        %v493 = vrot.slane %v488, %v492
        %v511 = vunpack.c.l.b16 %v470
        %v512 = vunpack.c.l.b16 %v471
        %v513 = vunpack.c.l.b16 %v472
        %v514 = vunpack.c.l.b16 %v473
        %v515 = vunpack.c.l.b16 %v474
        %v516 = vunpack.c.l.b16 %v475
        %v517 = vunpack.c.l.b16 %v476
        %v518 = vunpack.c.l.b16 %v477
        %v519 = vunpack.c.l.b16 %v478
        %v520 = vunpack.c.l.b16 %v479
        %v521 = vunpack.c.l.b16 %v480
        %v522 = vunpack.c.l.b16 %v481
        %v523 = vunpack.c.l.b16 %v482
        %v524 = vunpack.c.l.b16 %v483
        %v525 = vunpack.c.l.b16 %v484
        %v526 = vunpack.c.l.b16 %v485
        %v527 = vpack.c.b16 %v512, %v511
        %v528 = vpack.c.b16 %v514, %v513
        %v529 = vpack.c.b16 %v516, %v515
        %v530 = vpack.c.b16 %v518, %v517
        %v531 = vpack.c.b16 %v520, %v519
        %v532 = vpack.c.b16 %v522, %v521
        %v533 = vpack.c.b16 %v524, %v523
        %v534 = vpack.c.b16 %v526, %v525
        %v537 = vunpack.c.l.b16 %v486
        %v538 = vunpack.c.l.b16 %v487
        %v539 = vpack.c.b16 %v538, %v537
        %vm541 = vcmask 130048
        %v543 = vsel %vm541, %v527, 0
        %v546 = vsel %vm541, %v528, 0
        %v549 = vsel %vm541, %v529, 0
        %v552 = vsel %vm541, %v530, 0
        %v555 = vsel %vm541, %v531, 0
        %v558 = vsel %vm541, %v532, 0
        %v561 = vsel %vm541, %v533, 0
        %v564 = vsel %vm541, %v534, 0
        %566 = vmatprep.subr.bf16.mxu0 0
        %567 = vmatpush1.bf16.msra.mxu0 %v539
        %568 = vmatprep.subr.bf16.mxu0 0
        %569 = vmatpush1.bf16.msra.mxu0 0
        %570 = vmatprep.subr.bf16.mxu0 0
        %571 = vmatpush1.bf16.msra.mxu0 0
        %572 = vmatprep.subr.bf16.mxu0 0
        %573 = vmatpush1.bf16.msra.mxu0 0
        %574 = vmatprep.subr.bf16.mxu0 0
        %575 = vmatpush1.bf16.msra.mxu0 0
        %576 = vmatprep.subr.bf16.mxu0 0
        %577 = vmatpush1.bf16.msra.mxu0 0
        %578 = vmatprep.subr.bf16.mxu0 0
        %579 = vmatpush1.bf16.msra.mxu0 0
        %580 = vmatprep.subr.bf16.mxu0 0
        %581 = vmatpush1.bf16.msra.mxu0 0
        %582 = vmatprep.subr.bf16.mxu0 0
        %583 = vmatpush1.bf16.msra.mxu0 0
        %584 = vmatprep.subr.bf16.mxu0 0
        %585 = vmatpush1.bf16.msra.mxu0 0
        %586 = vmatprep.subr.bf16.mxu0 0
        %587 = vmatpush1.bf16.msra.mxu0 0
        %588 = vmatprep.subr.bf16.mxu0 0
        %589 = vmatpush1.bf16.msra.mxu0 0
        %590 = vmatprep.subr.bf16.mxu0 0
        %591 = vmatpush1.bf16.msra.mxu0 0
        %592 = vmatprep.subr.bf16.mxu0 0
        %593 = vmatpush1.bf16.msra.mxu0 0
        %594 = vmatprep.subr.bf16.mxu0 0
        %595 = vmatpush1.bf16.msra.mxu0 0
        %596 = vmatprep.subr.bf16.mxu0 0
        %597 = vmatpush1.bf16.msra.mxu0 0
        %598 = vmatprep.mubr.bf16.mxu0 0
        %599 = vmatmul.mubr.bf16.gmra.mrb[0].mxu0 %v543
        %v600 = vpop.f32.mrb[0].mxu0
        %v601 = vadd.f32 %v493, %v600
        %v602 = vpop.f32.mrb[0].mxu0
        %v603 = vpop.f32.mrb[0].mxu0
        %v604 = vadd.f32 %v493, %v603
        %v605 = vpop.f32.mrb[0].mxu0
        %606 = vmatprep.mubr.bf16.mxu0 0
        %607 = vmatmul.mubr.bf16.gmra.mrb[0].mxu0 %v546
        %v608 = vpop.f32.mrb[0].mxu0
        %v609 = vadd.f32 %v493, %v608
        %v610 = vpop.f32.mrb[0].mxu0
        %v611 = vpop.f32.mrb[0].mxu0
        %v612 = vadd.f32 %v493, %v611
        %v613 = vpop.f32.mrb[0].mxu0
        %614 = vmatprep.mubr.bf16.mxu0 0
        %615 = vmatmul.mubr.bf16.gmra.mrb[0].mxu0 %v549
        %v616 = vpop.f32.mrb[0].mxu0
        %v617 = vadd.f32 %v493, %v616
        %v618 = vpop.f32.mrb[0].mxu0
        %v619 = vpop.f32.mrb[0].mxu0
        %v620 = vadd.f32 %v493, %v619
        %v621 = vpop.f32.mrb[0].mxu0
        %622 = vmatprep.mubr.bf16.mxu0 0
        %623 = vmatmul.mubr.bf16.gmra.mrb[0].mxu0 %v552
        %v624 = vpop.f32.mrb[0].mxu0
        %v625 = vadd.f32 %v493, %v624
        %v626 = vpop.f32.mrb[0].mxu0
        %v627 = vpop.f32.mrb[0].mxu0
        %v628 = vadd.f32 %v493, %v627
        %v629 = vpop.f32.mrb[0].mxu0
        %630 = vmatprep.mubr.bf16.mxu0 0
        %631 = vmatmul.mubr.bf16.gmra.mrb[0].mxu0 %v555
        %v632 = vpop.f32.mrb[0].mxu0
        %v633 = vadd.f32 %v493, %v632
        %v634 = vpop.f32.mrb[0].mxu0
        %v635 = vpop.f32.mrb[0].mxu0
        %v636 = vadd.f32 %v493, %v635
        %v637 = vpop.f32.mrb[0].mxu0
        %638 = vmatprep.mubr.bf16.mxu0 0
        %639 = vmatmul.mubr.bf16.gmra.mrb[0].mxu0 %v558
        %v640 = vpop.f32.mrb[0].mxu0
        %v641 = vadd.f32 %v493, %v640
        %v642 = vpop.f32.mrb[0].mxu0
        %v643 = vpop.f32.mrb[0].mxu0
        %v644 = vadd.f32 %v493, %v643
        %v645 = vpop.f32.mrb[0].mxu0
        %646 = vmatprep.mubr.bf16.mxu0 0
        %647 = vmatmul.mubr.bf16.gmra.mrb[0].mxu0 %v561
        %v648 = vpop.f32.mrb[0].mxu0
        %v649 = vadd.f32 %v493, %v648
        %v650 = vpop.f32.mrb[0].mxu0
        %v651 = vpop.f32.mrb[0].mxu0
        %v652 = vadd.f32 %v493, %v651
        %v653 = vpop.f32.mrb[0].mxu0
        %654 = vmatprep.mubr.bf16.mxu0 0
        %655 = vmatmul.mubr.bf16.gmra.mrb[0].mxu0 %v564
        %v656 = vpop.f32.mrb[0].mxu0
        %v657 = vadd.f32 %v493, %v656
        %v658 = vpop.f32.mrb[0].mxu0
        %v659 = vpop.f32.mrb[0].mxu0
        %v660 = vadd.f32 %v493, %v659
        %v661 = vpop.f32.mrb[0].mxu0
        %662 = vdwg.mxu0
        %v663 = vpack.c.bf16 %v604, %v601
        %v664 = vpack.c.bf16 %v612, %v609
        %v665 = vpack.c.bf16 %v620, %v617
        %v666 = vpack.c.bf16 %v628, %v625
        %v667 = vpack.c.bf16 %v636, %v633
        %v668 = vpack.c.bf16 %v644, %v641
        %v669 = vpack.c.bf16 %v652, %v649
        %v670 = vpack.c.bf16 %v660, %v657
        %671 = vst.msk [vmem:[#allocation5] sm:$0xff] %vm453, %v663
        %672 = vst.msk [vmem:[#allocation5 + $0x8] sm:$0xff] %vm453, %v664
        %673 = vst.msk [vmem:[#allocation5 + $0x10] sm:$0xff] %vm453, %v665
        %674 = vst.msk [vmem:[#allocation5 + $0x18] sm:$0xff] %vm453, %v666
        %675 = vst.msk [vmem:[#allocation5 + $0x20] sm:$0xff] %vm453, %v667
        %676 = vst.msk [vmem:[#allocation5 + $0x28] sm:$0xff] %vm453, %v668
        %677 = vst.msk [vmem:[#allocation5 + $0x30] sm:$0xff] %vm453, %v669
        %678 = vst.msk [vmem:[#allocation5 + $0x38] sm:$0xff] %vm453, %v670
      $region60: #{tpu_custom_call.1} parent=55 // pred_fallthru
        _
      %v679 = vld [vmem:[%s403] sm:$0xf]
      %v680 = vld [vmem:[%s403 + $0x4] sm:$0xf]
      %v681 = vld [vmem:[%s403 + $0x8] sm:$0xf]
      %v682 = vld [vmem:[%s403 + $0xc] sm:$0xf]
      %v683 = vld [vmem:[%s403 + $0x10] sm:$0xf]
      %v684 = vld [vmem:[%s403 + $0x14] sm:$0xf]
      %v685 = vld [vmem:[%s403 + $0x18] sm:$0xf]
      %v686 = vld [vmem:[%s403 + $0x1c] sm:$0xf]
      %v687 = vld [vmem:[%s403 + $0x20] sm:$0xf]
      %v688 = vld [vmem:[%s403 + $0x24] sm:$0xf]
      %v689 = vld [vmem:[%s403 + $0x28] sm:$0xf]
      %v690 = vld [vmem:[%s403 + $0x2c] sm:$0xf]
      %v691 = vld [vmem:[%s403 + $0x30] sm:$0xf]
      %v692 = vld [vmem:[%s403 + $0x34] sm:$0xf]
      %v693 = vld [vmem:[%s403 + $0x38] sm:$0xf]
      %v694 = vld [vmem:[%s403 + $0x3c] sm:$0xf]
      %v695 = vld [vmem:[%s4] sm:$0xf]
      %v696 = vld [vmem:[%s4 + $0x4] sm:$0xf]
      %v697 = vld [vmem:[%s5] sm:$0x1]
      %v699 = vlaneseq
      %v700 = vshrl.u32 %v699, 7
      %v701 = vsub.s32 0, %v700
      %v702 = vrot.slane %v697, %v701
      %v720 = vunpack.c.l.b16 %v679
      %v721 = vunpack.c.l.b16 %v680
      %v722 = vunpack.c.l.b16 %v681
      %v723 = vunpack.c.l.b16 %v682
      %v724 = vunpack.c.l.b16 %v683
      %v725 = vunpack.c.l.b16 %v684
      %v726 = vunpack.c.l.b16 %v685
      %v727 = vunpack.c.l.b16 %v686
      %v728 = vunpack.c.l.b16 %v687
      %v729 = vunpack.c.l.b16 %v688
      %v730 = vunpack.c.l.b16 %v689
      %v731 = vunpack.c.l.b16 %v690
      %v732 = vunpack.c.l.b16 %v691
      %v733 = vunpack.c.l.b16 %v692
      %v734 = vunpack.c.l.b16 %v693
      %v735 = vunpack.c.l.b16 %v694
      %v736 = vpack.c.b16 %v721, %v720
      %v737 = vpack.c.b16 %v723, %v722
      %v738 = vpack.c.b16 %v725, %v724
      %v739 = vpack.c.b16 %v727, %v726
      %v740 = vpack.c.b16 %v729, %v728
      %v741 = vpack.c.b16 %v731, %v730
      %v742 = vpack.c.b16 %v733, %v732
      %v743 = vpack.c.b16 %v735, %v734
      %v746 = vunpack.c.l.b16 %v695
      %v747 = vunpack.c.l.b16 %v696
      %v748 = vpack.c.b16 %v747, %v746
      %vm750 = vcmask 130048
      %v752 = vsel %vm750, %v736, 0
      %v755 = vsel %vm750, %v737, 0
      %v758 = vsel %vm750, %v738, 0
      %v761 = vsel %vm750, %v739, 0
      %v764 = vsel %vm750, %v740, 0
      %v767 = vsel %vm750, %v741, 0
      %v770 = vsel %vm750, %v742, 0
      %v773 = vsel %vm750, %v743, 0
      %775 = vmatprep.subr.bf16.mxu0 0
      %776 = vmatpush1.bf16.msra.mxu0 %v748
      %777 = vmatprep.subr.bf16.mxu0 0
      %778 = vmatpush1.bf16.msra.mxu0 0
      %779 = vmatprep.subr.bf16.mxu0 0
      %780 = vmatpush1.bf16.msra.mxu0 0
      %781 = vmatprep.subr.bf16.mxu0 0
      %782 = vmatpush1.bf16.msra.mxu0 0
      %783 = vmatprep.subr.bf16.mxu0 0
      %784 = vmatpush1.bf16.msra.mxu0 0
      %785 = vmatprep.subr.bf16.mxu0 0
      %786 = vmatpush1.bf16.msra.mxu0 0
      %787 = vmatprep.subr.bf16.mxu0 0
      %788 = vmatpush1.bf16.msra.mxu0 0
      %789 = vmatprep.subr.bf16.mxu0 0
      %790 = vmatpush1.bf16.msra.mxu0 0
      %791 = vmatprep.subr.bf16.mxu0 0
      %792 = vmatpush1.bf16.msra.mxu0 0
      %793 = vmatprep.subr.bf16.mxu0 0
      %794 = vmatpush1.bf16.msra.mxu0 0
      %795 = vmatprep.subr.bf16.mxu0 0
      %796 = vmatpush1.bf16.msra.mxu0 0
      %797 = vmatprep.subr.bf16.mxu0 0
      %798 = vmatpush1.bf16.msra.mxu0 0
      %799 = vmatprep.subr.bf16.mxu0 0
      %800 = vmatpush1.bf16.msra.mxu0 0
      %801 = vmatprep.subr.bf16.mxu0 0
      %802 = vmatpush1.bf16.msra.mxu0 0
      %803 = vmatprep.subr.bf16.mxu0 0
      %804 = vmatpush1.bf16.msra.mxu0 0
      %805 = vmatprep.subr.bf16.mxu0 0
      %806 = vmatpush1.bf16.msra.mxu0 0
      %807 = vmatprep.mubr.bf16.mxu0 0
      %808 = vmatmul.mubr.bf16.gmra.mrb[0].mxu0 %v752
      %v809 = vpop.f32.mrb[0].mxu0
      %v810 = vadd.f32 %v702, %v809
      %v811 = vpop.f32.mrb[0].mxu0
      %v812 = vpop.f32.mrb[0].mxu0
      %v813 = vadd.f32 %v702, %v812
      %v814 = vpop.f32.mrb[0].mxu0
      %815 = vmatprep.mubr.bf16.mxu0 0
      %816 = vmatmul.mubr.bf16.gmra.mrb[0].mxu0 %v755
      %v817 = vpop.f32.mrb[0].mxu0
      %v818 = vadd.f32 %v702, %v817
      %v819 = vpop.f32.mrb[0].mxu0
      %v820 = vpop.f32.mrb[0].mxu0
      %v821 = vadd.f32 %v702, %v820
      %v822 = vpop.f32.mrb[0].mxu0
      %823 = vmatprep.mubr.bf16.mxu0 0
      %824 = vmatmul.mubr.bf16.gmra.mrb[0].mxu0 %v758
      %v825 = vpop.f32.mrb[0].mxu0
      %v826 = vadd.f32 %v702, %v825
      %v827 = vpop.f32.mrb[0].mxu0
      %v828 = vpop.f32.mrb[0].mxu0
      %v829 = vadd.f32 %v702, %v828
      %v830 = vpop.f32.mrb[0].mxu0
      %831 = vmatprep.mubr.bf16.mxu0 0
      %832 = vmatmul.mubr.bf16.gmra.mrb[0].mxu0 %v761
      %v833 = vpop.f32.mrb[0].mxu0
      %v834 = vadd.f32 %v702, %v833
      %v835 = vpop.f32.mrb[0].mxu0
      %v836 = vpop.f32.mrb[0].mxu0
      %v837 = vadd.f32 %v702, %v836
      %v838 = vpop.f32.mrb[0].mxu0
      %839 = vmatprep.mubr.bf16.mxu0 0
      %840 = vmatmul.mubr.bf16.gmra.mrb[0].mxu0 %v764
      %v841 = vpop.f32.mrb[0].mxu0
      %v842 = vadd.f32 %v702, %v841
      %v843 = vpop.f32.mrb[0].mxu0
      %v844 = vpop.f32.mrb[0].mxu0
      %v845 = vadd.f32 %v702, %v844
      %v846 = vpop.f32.mrb[0].mxu0
      %847 = vmatprep.mubr.bf16.mxu0 0
      %848 = vmatmul.mubr.bf16.gmra.mrb[0].mxu0 %v767
      %v849 = vpop.f32.mrb[0].mxu0
      %v850 = vadd.f32 %v702, %v849
      %v851 = vpop.f32.mrb[0].mxu0
      %v852 = vpop.f32.mrb[0].mxu0
      %v853 = vadd.f32 %v702, %v852
      %v854 = vpop.f32.mrb[0].mxu0
      %855 = vmatprep.mubr.bf16.mxu0 0
      %856 = vmatmul.mubr.bf16.gmra.mrb[0].mxu0 %v770
      %v857 = vpop.f32.mrb[0].mxu0
      %v858 = vadd.f32 %v702, %v857
      %v859 = vpop.f32.mrb[0].mxu0
      %v860 = vpop.f32.mrb[0].mxu0
      %v861 = vadd.f32 %v702, %v860
      %v862 = vpop.f32.mrb[0].mxu0
      %863 = vmatprep.mubr.bf16.mxu0 0
      %864 = vmatmul.mubr.bf16.gmra.mrb[0].mxu0 %v773
      %v865 = vpop.f32.mrb[0].mxu0
      %v866 = vadd.f32 %v702, %v865
      %v867 = vpop.f32.mrb[0].mxu0
      %v868 = vpop.f32.mrb[0].mxu0
      %v869 = vadd.f32 %v702, %v868
      %v870 = vpop.f32.mrb[0].mxu0
      %871 = vdwg.mxu0
      %v872 = vpack.c.bf16 %v813, %v810
      %v873 = vpack.c.bf16 %v821, %v818
      %v874 = vpack.c.bf16 %v829, %v826
      %v875 = vpack.c.bf16 %v837, %v834
      %v876 = vpack.c.bf16 %v845, %v842
      %v877 = vpack.c.bf16 %v853, %v850
      %v878 = vpack.c.bf16 %v861, %v858
      %v879 = vpack.c.bf16 %v869, %v866
      %v880 = vld [vmem:[#allocation5] sm:$0xff]
      %v881 = vld [vmem:[#allocation5 + $0x8] sm:$0xff]
      %v882 = vld [vmem:[#allocation5 + $0x10] sm:$0xff]
      %v883 = vld [vmem:[#allocation5 + $0x18] sm:$0xff]
      %v884 = vld [vmem:[#allocation5 + $0x20] sm:$0xff]
      %v885 = vld [vmem:[#allocation5 + $0x28] sm:$0xff]
      %v886 = vld [vmem:[#allocation5 + $0x30] sm:$0xff]
      %v887 = vld [vmem:[#allocation5 + $0x38] sm:$0xff]
      %vm888 = vcmask 64512
      %v890 = vsel %vm888, %v880, 0
      %v893 = vsel %vm888, %v881, 0
      %v896 = vsel %vm888, %v882, 0
      %v899 = vsel %vm888, %v883, 0
      %v902 = vsel %vm888, %v884, 0
      %v905 = vsel %vm888, %v885, 0
      %v908 = vsel %vm888, %v886, 0
      %v911 = vsel %vm888, %v887, 0
      %v914 = vsel %vm888, %v872, 0
      %v917 = vsel %vm888, %v873, 0
      %v920 = vsel %vm888, %v874, 0
      %v923 = vsel %vm888, %v875, 0
      %v926 = vsel %vm888, %v876, 0
      %v929 = vsel %vm888, %v877, 0
      %v932 = vsel %vm888, %v878, 0
      %v935 = vsel %vm888, %v879, 0
      %937 = vmatprep.subr.bf16.mxu0 0
      %938 = vmatpush1.bf16.xpose.msra.mxu0 %v914
      %939 = vmatprep.subr.bf16.mxu0 0
      %940 = vmatpush1.bf16.xpose.msra.mxu0 %v917
      %941 = vmatprep.subr.bf16.mxu0 0
      %942 = vmatpush1.bf16.xpose.msra.mxu0 %v920
      %943 = vmatprep.subr.bf16.mxu0 0
      %944 = vmatpush1.bf16.xpose.msra.mxu0 %v923
      %945 = vmatprep.subr.bf16.mxu0 0
      %946 = vmatpush1.bf16.xpose.msra.mxu0 %v926
      %947 = vmatprep.subr.bf16.mxu0 0
      %948 = vmatpush1.bf16.xpose.msra.mxu0 %v929
      %949 = vmatprep.subr.bf16.mxu0 0
      %950 = vmatpush1.bf16.xpose.msra.mxu0 %v932
      %951 = vmatprep.subr.bf16.mxu0 0
      %952 = vmatpush1.bf16.xpose.msra.mxu0 %v935
      %953 = vmatprep.subr.bf16.mxu0 0
      %954 = vmatpush1.bf16.xpose.msra.mxu0 0
      %955 = vmatprep.subr.bf16.mxu0 0
      %956 = vmatpush1.bf16.xpose.msra.mxu0 0
      %957 = vmatprep.subr.bf16.mxu0 0
      %958 = vmatpush1.bf16.xpose.msra.mxu0 0
      %959 = vmatprep.subr.bf16.mxu0 0
      %960 = vmatpush1.bf16.xpose.msra.mxu0 0
      %961 = vmatprep.subr.bf16.mxu0 0
      %962 = vmatpush1.bf16.xpose.msra.mxu0 0
      %963 = vmatprep.subr.bf16.mxu0 0
      %964 = vmatpush1.bf16.xpose.msra.mxu0 0
      %965 = vmatprep.subr.bf16.mxu0 0
      %966 = vmatpush1.bf16.xpose.msra.mxu0 0
      %967 = vmatprep.subr.bf16.mxu0 0
      %968 = vmatpush1.bf16.xpose.msra.mxu0 0
      %969 = vmatprep.mubr.bf16.mxu0 0
      %970 = vmatmul.mubr.bf16.gmra.mrb[0].mxu0 %v890
      %v971 = vpop.f32.mrb[0].mxu0
      %v972 = vadd.f32 0.0, %v971
      %v973 = vpop.f32.mrb[0].mxu0
      %v974 = vpop.f32.mrb[0].mxu0
      %v975 = vadd.f32 0.0, %v974
      %v976 = vpop.f32.mrb[0].mxu0
      %977 = vmatprep.mubr.bf16.mxu0 0
      %978 = vmatmul.mubr.bf16.gmra.mrb[0].mxu0 %v893
      %v979 = vpop.f32.mrb[0].mxu0
      %v980 = vadd.f32 0.0, %v979
      %v981 = vpop.f32.mrb[0].mxu0
      %v982 = vpop.f32.mrb[0].mxu0
      %v983 = vadd.f32 0.0, %v982
      %v984 = vpop.f32.mrb[0].mxu0
      %985 = vmatprep.mubr.bf16.mxu0 0
      %986 = vmatmul.mubr.bf16.gmra.mrb[0].mxu0 %v896
      %v987 = vpop.f32.mrb[0].mxu0
      %v988 = vadd.f32 0.0, %v987
      %v989 = vpop.f32.mrb[0].mxu0
      %v990 = vpop.f32.mrb[0].mxu0
      %v991 = vadd.f32 0.0, %v990
      %v992 = vpop.f32.mrb[0].mxu0
      %993 = vmatprep.mubr.bf16.mxu0 0
      %994 = vmatmul.mubr.bf16.gmra.mrb[0].mxu0 %v899
      %v995 = vpop.f32.mrb[0].mxu0
      %v996 = vadd.f32 0.0, %v995
      %v997 = vpop.f32.mrb[0].mxu0
      %v998 = vpop.f32.mrb[0].mxu0
      %v999 = vadd.f32 0.0, %v998
      %v1000 = vpop.f32.mrb[0].mxu0
      %1001 = vmatprep.mubr.bf16.mxu0 0
      %1002 = vmatmul.mubr.bf16.gmra.mrb[0].mxu0 %v902
      %v1003 = vpop.f32.mrb[0].mxu0
      %v1004 = vadd.f32 0.0, %v1003
      %v1005 = vpop.f32.mrb[0].mxu0
      %v1006 = vpop.f32.mrb[0].mxu0
      %v1007 = vadd.f32 0.0, %v1006
      %v1008 = vpop.f32.mrb[0].mxu0
      %1009 = vmatprep.mubr.bf16.mxu0 0
      %1010 = vmatmul.mubr.bf16.gmra.mrb[0].mxu0 %v905
      %v1011 = vpop.f32.mrb[0].mxu0
      %v1012 = vadd.f32 0.0, %v1011
      %v1013 = vpop.f32.mrb[0].mxu0
      %v1014 = vpop.f32.mrb[0].mxu0
      %v1015 = vadd.f32 0.0, %v1014
      %v1016 = vpop.f32.mrb[0].mxu0
      %1017 = vmatprep.mubr.bf16.mxu0 0
      %1018 = vmatmul.mubr.bf16.gmra.mrb[0].mxu0 %v908
      %v1019 = vpop.f32.mrb[0].mxu0
      %v1020 = vadd.f32 0.0, %v1019
      %v1021 = vpop.f32.mrb[0].mxu0
      %v1022 = vpop.f32.mrb[0].mxu0
      %v1023 = vadd.f32 0.0, %v1022
      %v1024 = vpop.f32.mrb[0].mxu0
      %1025 = vmatprep.mubr.bf16.mxu0 0
      %1026 = vmatmul.mubr.bf16.gmra.mrb[0].mxu0 %v911
      %v1027 = vpop.f32.mrb[0].mxu0
      %v1028 = vadd.f32 0.0, %v1027
      %v1029 = vpop.f32.mrb[0].mxu0
      %v1030 = vpop.f32.mrb[0].mxu0
      %v1031 = vadd.f32 0.0, %v1030
      %v1032 = vpop.f32.mrb[0].mxu0
      %1033 = vdwg.mxu0
      %v1034 = vld [vmem:[#allocation2] sm:$0xff]
      %v1035 = vld [vmem:[#allocation2 + $0x8] sm:$0xff]
      %v1036 = vld [vmem:[#allocation2 + $0x10] sm:$0xff]
      %v1037 = vld [vmem:[#allocation2 + $0x18] sm:$0xff]
      %v1038 = vld [vmem:[#allocation2 + $0x20] sm:$0xff]
      %v1039 = vld [vmem:[#allocation2 + $0x28] sm:$0xff]
      %v1040 = vld [vmem:[#allocation2 + $0x30] sm:$0xff]
      %v1041 = vld [vmem:[#allocation2 + $0x38] sm:$0xff]
      %v1042 = vld [vmem:[#allocation2 + $0x40] sm:$0xff]
      %v1043 = vld [vmem:[#allocation2 + $0x48] sm:$0xff]
      %v1044 = vld [vmem:[#allocation2 + $0x50] sm:$0xff]
      %v1045 = vld [vmem:[#allocation2 + $0x58] sm:$0xff]
      %v1046 = vld [vmem:[#allocation2 + $0x60] sm:$0xff]
      %v1047 = vld [vmem:[#allocation2 + $0x68] sm:$0xff]
      %v1048 = vld [vmem:[#allocation2 + $0x70] sm:$0xff]
      %v1049 = vld [vmem:[#allocation2 + $0x78] sm:$0xff]
      %1050 = vmax.xlane.f32.xlu0 %v972
      %v1051 = vpop.xlane.xlu0 %1050
      %1052 = vmax.xlane.f32.xlu0 %v975
      %v1053 = vpop.xlane.xlu0 %1052
      %1054 = vmax.xlane.f32.xlu0 %v980
      %v1055 = vpop.xlane.xlu0 %1054
      %1056 = vmax.xlane.f32.xlu0 %v983
      %v1057 = vpop.xlane.xlu0 %1056
      %1058 = vmax.xlane.f32.xlu0 %v988
      %v1059 = vpop.xlane.xlu0 %1058
      %1060 = vmax.xlane.f32.xlu0 %v991
      %v1061 = vpop.xlane.xlu0 %1060
      %1062 = vmax.xlane.f32.xlu0 %v996
      %v1063 = vpop.xlane.xlu0 %1062
      %1064 = vmax.xlane.f32.xlu0 %v999
      %v1065 = vpop.xlane.xlu0 %1064
      %1066 = vmax.xlane.f32.xlu0 %v1004
      %v1067 = vpop.xlane.xlu0 %1066
      %1068 = vmax.xlane.f32.xlu0 %v1007
      %v1069 = vpop.xlane.xlu0 %1068
      %1070 = vmax.xlane.f32.xlu0 %v1012
      %v1071 = vpop.xlane.xlu0 %1070
      %1072 = vmax.xlane.f32.xlu0 %v1015
      %v1073 = vpop.xlane.xlu0 %1072
      %1074 = vmax.xlane.f32.xlu0 %v1020
      %v1075 = vpop.xlane.xlu0 %1074
      %1076 = vmax.xlane.f32.xlu0 %v1023
      %v1077 = vpop.xlane.xlu0 %1076
      %1078 = vmax.xlane.f32.xlu0 %v1028
      %v1079 = vpop.xlane.xlu0 %1078
      %1080 = vmax.xlane.f32.xlu0 %v1031
      %v1081 = vpop.xlane.xlu0 %1080
      %v1082 = vmax.f32 %v1034, %v1051
      %v1083 = vmax.f32 %v1035, %v1053
      %v1084 = vmax.f32 %v1036, %v1055
      %v1085 = vmax.f32 %v1037, %v1057
      %v1086 = vmax.f32 %v1038, %v1059
      %v1087 = vmax.f32 %v1039, %v1061
      %v1088 = vmax.f32 %v1040, %v1063
      %v1089 = vmax.f32 %v1041, %v1065
      %v1090 = vmax.f32 %v1042, %v1067
      %v1091 = vmax.f32 %v1043, %v1069
      %v1092 = vmax.f32 %v1044, %v1071
      %v1093 = vmax.f32 %v1045, %v1073
      %v1094 = vmax.f32 %v1046, %v1075
      %v1095 = vmax.f32 %v1047, %v1077
      %v1096 = vmax.f32 %v1048, %v1079
      %v1097 = vmax.f32 %v1049, %v1081
      %v1098 = vsub.f32 %v1034, %v1082
      %v1099 = vsub.f32 %v1035, %v1083
      %v1100 = vsub.f32 %v1036, %v1084
      %v1101 = vsub.f32 %v1037, %v1085
      %v1102 = vsub.f32 %v1038, %v1086
      %v1103 = vsub.f32 %v1039, %v1087
      %v1104 = vsub.f32 %v1040, %v1088
      %v1105 = vsub.f32 %v1041, %v1089
      %v1106 = vsub.f32 %v1042, %v1090
      %v1107 = vsub.f32 %v1043, %v1091
      %v1108 = vsub.f32 %v1044, %v1092
      %v1109 = vsub.f32 %v1045, %v1093
      %v1110 = vsub.f32 %v1046, %v1094
      %v1111 = vsub.f32 %v1047, %v1095
      %v1112 = vsub.f32 %v1048, %v1096
      %v1113 = vsub.f32 %v1049, %v1097
      %v1114 = vmul.f32 %v1098, 1.442695
      %v1115 = vpow.pop %v1114
      %v1116 = vmul.f32 %v1099, 1.442695
      %v1117 = vpow.pop %v1116
      %v1118 = vmul.f32 %v1100, 1.442695
      %v1119 = vpow.pop %v1118
      %v1120 = vmul.f32 %v1101, 1.442695
      %v1121 = vpow.pop %v1120
      %v1122 = vmul.f32 %v1102, 1.442695
      %v1123 = vpow.pop %v1122
      %v1124 = vmul.f32 %v1103, 1.442695
      %v1125 = vpow.pop %v1124
      %v1126 = vmul.f32 %v1104, 1.442695
      %v1127 = vpow.pop %v1126
      %v1128 = vmul.f32 %v1105, 1.442695
      %v1129 = vpow.pop %v1128
      %v1130 = vmul.f32 %v1106, 1.442695
      %v1131 = vpow.pop %v1130
      %v1132 = vmul.f32 %v1107, 1.442695
      %v1133 = vpow.pop %v1132
      %v1134 = vmul.f32 %v1108, 1.442695
      %v1135 = vpow.pop %v1134
      %v1136 = vmul.f32 %v1109, 1.442695
      %v1137 = vpow.pop %v1136
      %v1138 = vmul.f32 %v1110, 1.442695
      %v1139 = vpow.pop %v1138
      %v1140 = vmul.f32 %v1111, 1.442695
      %v1141 = vpow.pop %v1140
      %v1142 = vmul.f32 %v1112, 1.442695
      %v1143 = vpow.pop %v1142
      %v1144 = vmul.f32 %v1113, 1.442695
      %v1145 = vpow.pop %v1144
      %1147 = vset.pattern.permute.xlu0 0
      %1148 = vperm.xlu0 %1147, %v1082
      %v1149 = vpop.permute.xlu0 %1148
      %1152 = vset.pattern.permute.xlu0 0
      %1153 = vperm.xlu0 %1152, %v1083
      %v1154 = vpop.permute.xlu0 %1153
      %1157 = vset.pattern.permute.xlu0 0
      %1158 = vperm.xlu0 %1157, %v1084
      %v1159 = vpop.permute.xlu0 %1158
      %1162 = vset.pattern.permute.xlu0 0
      %1163 = vperm.xlu0 %1162, %v1085
      %v1164 = vpop.permute.xlu0 %1163
      %1167 = vset.pattern.permute.xlu0 0
      %1168 = vperm.xlu0 %1167, %v1086
      %v1169 = vpop.permute.xlu0 %1168
      %1172 = vset.pattern.permute.xlu0 0
      %1173 = vperm.xlu0 %1172, %v1087
      %v1174 = vpop.permute.xlu0 %1173
      %1177 = vset.pattern.permute.xlu0 0
      %1178 = vperm.xlu0 %1177, %v1088
      %v1179 = vpop.permute.xlu0 %1178
      %1182 = vset.pattern.permute.xlu0 0
      %1183 = vperm.xlu0 %1182, %v1089
      %v1184 = vpop.permute.xlu0 %1183
      %1187 = vset.pattern.permute.xlu0 0
      %1188 = vperm.xlu0 %1187, %v1090
      %v1189 = vpop.permute.xlu0 %1188
      %1192 = vset.pattern.permute.xlu0 0
      %1193 = vperm.xlu0 %1192, %v1091
      %v1194 = vpop.permute.xlu0 %1193
      %1197 = vset.pattern.permute.xlu0 0
      %1198 = vperm.xlu0 %1197, %v1092
      %v1199 = vpop.permute.xlu0 %1198
      %1202 = vset.pattern.permute.xlu0 0
      %1203 = vperm.xlu0 %1202, %v1093
      %v1204 = vpop.permute.xlu0 %1203
      %1207 = vset.pattern.permute.xlu0 0
      %1208 = vperm.xlu0 %1207, %v1094
      %v1209 = vpop.permute.xlu0 %1208
      %1212 = vset.pattern.permute.xlu0 0
      %1213 = vperm.xlu0 %1212, %v1095
      %v1214 = vpop.permute.xlu0 %1213
      %1217 = vset.pattern.permute.xlu0 0
      %1218 = vperm.xlu0 %1217, %v1096
      %v1219 = vpop.permute.xlu0 %1218
      %1222 = vset.pattern.permute.xlu0 0
      %1223 = vperm.xlu0 %1222, %v1097
      %v1224 = vpop.permute.xlu0 %1223
      %v1226 = vsub.f32 %v972, %v1149
      %v1227 = vsub.f32 %v975, %v1154
      %v1228 = vsub.f32 %v980, %v1159
      %v1229 = vsub.f32 %v983, %v1164
      %v1230 = vsub.f32 %v988, %v1169
      %v1231 = vsub.f32 %v991, %v1174
      %v1232 = vsub.f32 %v996, %v1179
      %v1233 = vsub.f32 %v999, %v1184
      %v1234 = vsub.f32 %v1004, %v1189
      %v1235 = vsub.f32 %v1007, %v1194
      %v1236 = vsub.f32 %v1012, %v1199
      %v1237 = vsub.f32 %v1015, %v1204
      %v1238 = vsub.f32 %v1020, %v1209
      %v1239 = vsub.f32 %v1023, %v1214
      %v1240 = vsub.f32 %v1028, %v1219
      %v1241 = vsub.f32 %v1031, %v1224
      %v1242 = vmul.f32 %v1226, 1.442695
      %v1243 = vpow.pop %v1242
      %v1244 = vmul.f32 %v1227, 1.442695
      %v1245 = vpow.pop %v1244
      %v1246 = vmul.f32 %v1228, 1.442695
      %v1247 = vpow.pop %v1246
      %v1248 = vmul.f32 %v1229, 1.442695
      %v1249 = vpow.pop %v1248
      %v1250 = vmul.f32 %v1230, 1.442695
      %v1251 = vpow.pop %v1250
      %v1252 = vmul.f32 %v1231, 1.442695
      %v1253 = vpow.pop %v1252
      %v1254 = vmul.f32 %v1232, 1.442695
      %v1255 = vpow.pop %v1254
      %v1256 = vmul.f32 %v1233, 1.442695
      %v1257 = vpow.pop %v1256
      %v1258 = vmul.f32 %v1234, 1.442695
      %v1259 = vpow.pop %v1258
      %v1260 = vmul.f32 %v1235, 1.442695
      %v1261 = vpow.pop %v1260
      %v1262 = vmul.f32 %v1236, 1.442695
      %v1263 = vpow.pop %v1262
      %v1264 = vmul.f32 %v1237, 1.442695
      %v1265 = vpow.pop %v1264
      %v1266 = vmul.f32 %v1238, 1.442695
      %v1267 = vpow.pop %v1266
      %v1268 = vmul.f32 %v1239, 1.442695
      %v1269 = vpow.pop %v1268
      %v1270 = vmul.f32 %v1240, 1.442695
      %v1271 = vpow.pop %v1270
      %v1272 = vmul.f32 %v1241, 1.442695
      %v1273 = vpow.pop %v1272
      %v1274 = vld [vmem:[#allocation3] sm:$0xff]
      %v1275 = vld [vmem:[#allocation3 + $0x8] sm:$0xff]
      %v1276 = vld [vmem:[#allocation3 + $0x10] sm:$0xff]
      %v1277 = vld [vmem:[#allocation3 + $0x18] sm:$0xff]
      %v1278 = vld [vmem:[#allocation3 + $0x20] sm:$0xff]
      %v1279 = vld [vmem:[#allocation3 + $0x28] sm:$0xff]
      %v1280 = vld [vmem:[#allocation3 + $0x30] sm:$0xff]
      %v1281 = vld [vmem:[#allocation3 + $0x38] sm:$0xff]
      %v1282 = vld [vmem:[#allocation3 + $0x40] sm:$0xff]
      %v1283 = vld [vmem:[#allocation3 + $0x48] sm:$0xff]
      %v1284 = vld [vmem:[#allocation3 + $0x50] sm:$0xff]
      %v1285 = vld [vmem:[#allocation3 + $0x58] sm:$0xff]
      %v1286 = vld [vmem:[#allocation3 + $0x60] sm:$0xff]
      %v1287 = vld [vmem:[#allocation3 + $0x68] sm:$0xff]
      %v1288 = vld [vmem:[#allocation3 + $0x70] sm:$0xff]
      %v1289 = vld [vmem:[#allocation3 + $0x78] sm:$0xff]
      %v1290 = vmul.f32 %v1115, %v1274
      %v1291 = vmul.f32 %v1117, %v1275
      %v1292 = vmul.f32 %v1119, %v1276
      %v1293 = vmul.f32 %v1121, %v1277
      %v1294 = vmul.f32 %v1123, %v1278
      %v1295 = vmul.f32 %v1125, %v1279
      %v1296 = vmul.f32 %v1127, %v1280
      %v1297 = vmul.f32 %v1129, %v1281
      %v1298 = vmul.f32 %v1131, %v1282
      %v1299 = vmul.f32 %v1133, %v1283
      %v1300 = vmul.f32 %v1135, %v1284
      %v1301 = vmul.f32 %v1137, %v1285
      %v1302 = vmul.f32 %v1139, %v1286
      %v1303 = vmul.f32 %v1141, %v1287
      %v1304 = vmul.f32 %v1143, %v1288
      %v1305 = vmul.f32 %v1145, %v1289
      %1306 = vadd.xlane.f32.xlu0 %v1243
      %v1307 = vpop.xlane.xlu0 %1306
      %1308 = vadd.xlane.f32.xlu0 %v1245
      %v1309 = vpop.xlane.xlu0 %1308
      %1310 = vadd.xlane.f32.xlu0 %v1247
      %v1311 = vpop.xlane.xlu0 %1310
      %1312 = vadd.xlane.f32.xlu0 %v1249
      %v1313 = vpop.xlane.xlu0 %1312
      %1314 = vadd.xlane.f32.xlu0 %v1251
      %v1315 = vpop.xlane.xlu0 %1314
      %1316 = vadd.xlane.f32.xlu0 %v1253
      %v1317 = vpop.xlane.xlu0 %1316
      %1318 = vadd.xlane.f32.xlu0 %v1255
      %v1319 = vpop.xlane.xlu0 %1318
      %1320 = vadd.xlane.f32.xlu0 %v1257
      %v1321 = vpop.xlane.xlu0 %1320
      %1322 = vadd.xlane.f32.xlu0 %v1259
      %v1323 = vpop.xlane.xlu0 %1322
      %1324 = vadd.xlane.f32.xlu0 %v1261
      %v1325 = vpop.xlane.xlu0 %1324
      %1326 = vadd.xlane.f32.xlu0 %v1263
      %v1327 = vpop.xlane.xlu0 %1326
      %1328 = vadd.xlane.f32.xlu0 %v1265
      %v1329 = vpop.xlane.xlu0 %1328
      %1330 = vadd.xlane.f32.xlu0 %v1267
      %v1331 = vpop.xlane.xlu0 %1330
      %1332 = vadd.xlane.f32.xlu0 %v1269
      %v1333 = vpop.xlane.xlu0 %1332
      %1334 = vadd.xlane.f32.xlu0 %v1271
      %v1335 = vpop.xlane.xlu0 %1334
      %1336 = vadd.xlane.f32.xlu0 %v1273
      %v1337 = vpop.xlane.xlu0 %1336
      %v1338 = vadd.f32 %v1290, %v1307
      %v1339 = vadd.f32 %v1291, %v1309
      %v1340 = vadd.f32 %v1292, %v1311
      %v1341 = vadd.f32 %v1293, %v1313
      %v1342 = vadd.f32 %v1294, %v1315
      %v1343 = vadd.f32 %v1295, %v1317
      %v1344 = vadd.f32 %v1296, %v1319
      %v1345 = vadd.f32 %v1297, %v1321
      %v1346 = vadd.f32 %v1298, %v1323
      %v1347 = vadd.f32 %v1299, %v1325
      %v1348 = vadd.f32 %v1300, %v1327
      %v1349 = vadd.f32 %v1301, %v1329
      %v1350 = vadd.f32 %v1302, %v1331
      %v1351 = vadd.f32 %v1303, %v1333
      %v1352 = vadd.f32 %v1304, %v1335
      %v1353 = vadd.f32 %v1305, %v1337
      %vm1354 = vcmask 7168
      %1355 = vst.msk [vmem:[#allocation3] sm:$0xff] %vm1354, %v1338
      %1356 = vst.msk [vmem:[#allocation3 + $0x8] sm:$0xff] %vm1354, %v1339
      %1357 = vst.msk [vmem:[#allocation3 + $0x10] sm:$0xff] %vm1354, %v1340
      %1358 = vst.msk [vmem:[#allocation3 + $0x18] sm:$0xff] %vm1354, %v1341
      %1359 = vst.msk [vmem:[#allocation3 + $0x20] sm:$0xff] %vm1354, %v1342
      %1360 = vst.msk [vmem:[#allocation3 + $0x28] sm:$0xff] %vm1354, %v1343
      %1361 = vst.msk [vmem:[#allocation3 + $0x30] sm:$0xff] %vm1354, %v1344
      %1362 = vst.msk [vmem:[#allocation3 + $0x38] sm:$0xff] %vm1354, %v1345
      %1363 = vst.msk [vmem:[#allocation3 + $0x40] sm:$0xff] %vm1354, %v1346
      %1364 = vst.msk [vmem:[#allocation3 + $0x48] sm:$0xff] %vm1354, %v1347
      %1365 = vst.msk [vmem:[#allocation3 + $0x50] sm:$0xff] %vm1354, %v1348
      %1366 = vst.msk [vmem:[#allocation3 + $0x58] sm:$0xff] %vm1354, %v1349
      %1367 = vst.msk [vmem:[#allocation3 + $0x60] sm:$0xff] %vm1354, %v1350
      %1368 = vst.msk [vmem:[#allocation3 + $0x68] sm:$0xff] %vm1354, %v1351
      %1369 = vst.msk [vmem:[#allocation3 + $0x70] sm:$0xff] %vm1354, %v1352
      %1370 = vst.msk [vmem:[#allocation3 + $0x78] sm:$0xff] %vm1354, %v1353
      %v1371 = vld [vmem:[#allocation4] sm:$0xff]
      %v1372 = vld [vmem:[#allocation4 + $0x8] sm:$0xff]
      %v1373 = vld [vmem:[#allocation4 + $0x10] sm:$0xff]
      %v1374 = vld [vmem:[#allocation4 + $0x18] sm:$0xff]
      %v1375 = vld [vmem:[#allocation4 + $0x20] sm:$0xff]
      %v1376 = vld [vmem:[#allocation4 + $0x28] sm:$0xff]
      %v1377 = vld [vmem:[#allocation4 + $0x30] sm:$0xff]
      %v1378 = vld [vmem:[#allocation4 + $0x38] sm:$0xff]
      %v1379 = vld [vmem:[#allocation4 + $0x40] sm:$0xff]
      %v1380 = vld [vmem:[#allocation4 + $0x48] sm:$0xff]
      %v1381 = vld [vmem:[#allocation4 + $0x50] sm:$0xff]
      %v1382 = vld [vmem:[#allocation4 + $0x58] sm:$0xff]
      %v1383 = vld [vmem:[#allocation4 + $0x60] sm:$0xff]
      %v1384 = vld [vmem:[#allocation4 + $0x68] sm:$0xff]
      %v1385 = vld [vmem:[#allocation4 + $0x70] sm:$0xff]
      %v1386 = vld [vmem:[#allocation4 + $0x78] sm:$0xff]
      %1388 = vset.pattern.permute.xlu0 0
      %1389 = vperm.xlu0 %1388, %v1115
      %v1390 = vpop.permute.xlu0 %1389
      %1393 = vset.pattern.permute.xlu0 0
      %1394 = vperm.xlu0 %1393, %v1117
      %v1395 = vpop.permute.xlu0 %1394
      %1398 = vset.pattern.permute.xlu0 0
      %1399 = vperm.xlu0 %1398, %v1119
      %v1400 = vpop.permute.xlu0 %1399
      %1403 = vset.pattern.permute.xlu0 0
      %1404 = vperm.xlu0 %1403, %v1121
      %v1405 = vpop.permute.xlu0 %1404
      %1408 = vset.pattern.permute.xlu0 0
      %1409 = vperm.xlu0 %1408, %v1123
      %v1410 = vpop.permute.xlu0 %1409
      %1413 = vset.pattern.permute.xlu0 0
      %1414 = vperm.xlu0 %1413, %v1125
      %v1415 = vpop.permute.xlu0 %1414
      %1418 = vset.pattern.permute.xlu0 0
      %1419 = vperm.xlu0 %1418, %v1127
      %v1420 = vpop.permute.xlu0 %1419
      %1423 = vset.pattern.permute.xlu0 0
      %1424 = vperm.xlu0 %1423, %v1129
      %v1425 = vpop.permute.xlu0 %1424
      %1428 = vset.pattern.permute.xlu0 0
      %1429 = vperm.xlu0 %1428, %v1131
      %v1430 = vpop.permute.xlu0 %1429
      %1433 = vset.pattern.permute.xlu0 0
      %1434 = vperm.xlu0 %1433, %v1133
      %v1435 = vpop.permute.xlu0 %1434
      %1438 = vset.pattern.permute.xlu0 0
      %1439 = vperm.xlu0 %1438, %v1135
      %v1440 = vpop.permute.xlu0 %1439
      %1443 = vset.pattern.permute.xlu0 0
      %1444 = vperm.xlu0 %1443, %v1137
      %v1445 = vpop.permute.xlu0 %1444
      %1448 = vset.pattern.permute.xlu0 0
      %1449 = vperm.xlu0 %1448, %v1139
      %v1450 = vpop.permute.xlu0 %1449
      %1453 = vset.pattern.permute.xlu0 0
      %1454 = vperm.xlu0 %1453, %v1141
      %v1455 = vpop.permute.xlu0 %1454
      %1458 = vset.pattern.permute.xlu0 0
      %1459 = vperm.xlu0 %1458, %v1143
      %v1460 = vpop.permute.xlu0 %1459
      %1463 = vset.pattern.permute.xlu0 0
      %1464 = vperm.xlu0 %1463, %v1145
      %v1465 = vpop.permute.xlu0 %1464
      %v1467 = vmul.f32 %v1390, %v1371
      %v1468 = vmul.f32 %v1395, %v1372
      %v1469 = vmul.f32 %v1400, %v1373
      %v1470 = vmul.f32 %v1405, %v1374
      %v1471 = vmul.f32 %v1410, %v1375
      %v1472 = vmul.f32 %v1415, %v1376
      %v1473 = vmul.f32 %v1420, %v1377
      %v1474 = vmul.f32 %v1425, %v1378
      %v1475 = vmul.f32 %v1430, %v1379
      %v1476 = vmul.f32 %v1435, %v1380
      %v1477 = vmul.f32 %v1440, %v1381
      %v1478 = vmul.f32 %v1445, %v1382
      %v1479 = vmul.f32 %v1450, %v1383
      %v1480 = vmul.f32 %v1455, %v1384
      %v1481 = vmul.f32 %v1460, %v1385
      %v1482 = vmul.f32 %v1465, %v1386
      %v1483 = vpack.c.bf16 %v1245, %v1243
      %v1484 = vpack.c.bf16 %v1249, %v1247
      %v1485 = vpack.c.bf16 %v1253, %v1251
      %v1486 = vpack.c.bf16 %v1257, %v1255
      %v1487 = vpack.c.bf16 %v1261, %v1259
      %v1488 = vpack.c.bf16 %v1265, %v1263
      %v1489 = vpack.c.bf16 %v1269, %v1267
      %v1490 = vpack.c.bf16 %v1273, %v1271
      %1499 = vrot.lane.b32.xlu0 %v872, 120
      %v1500 = vpop.permute.xlu0 %1499
      %1501 = vrot.lane.b32.xlu0 %v873, 120
      %v1502 = vpop.permute.xlu0 %1501
      %1503 = vrot.lane.b32.xlu0 %v874, 120
      %v1504 = vpop.permute.xlu0 %1503
      %1505 = vrot.lane.b32.xlu0 %v875, 120
      %v1506 = vpop.permute.xlu0 %1505
      %1507 = vrot.lane.b32.xlu0 %v876, 120
      %v1508 = vpop.permute.xlu0 %1507
      %1509 = vrot.lane.b32.xlu0 %v877, 120
      %v1510 = vpop.permute.xlu0 %1509
      %1511 = vrot.lane.b32.xlu0 %v878, 120
      %v1512 = vpop.permute.xlu0 %1511
      %1513 = vrot.lane.b32.xlu0 %v879, 120
      %v1514 = vpop.permute.xlu0 %1513
      %1523 = vmatprep.subr.bf16.mxu0 0
      %1524 = vmatpush1.bf16.msra.mxu0 %v1500
      %1525 = vmatprep.subr.bf16.mxu0 0
      %1526 = vmatpush1.bf16.msra.mxu0 %v1502
      %1527 = vmatprep.subr.bf16.mxu0 0
      %1528 = vmatpush1.bf16.msra.mxu0 %v1504
      %1529 = vmatprep.subr.bf16.mxu0 0
      %1530 = vmatpush1.bf16.msra.mxu0 %v1506
      %1531 = vmatprep.subr.bf16.mxu0 0
      %1532 = vmatpush1.bf16.msra.mxu0 %v1508
      %1533 = vmatprep.subr.bf16.mxu0 0
      %1534 = vmatpush1.bf16.msra.mxu0 %v1510
      %1535 = vmatprep.subr.bf16.mxu0 0
      %1536 = vmatpush1.bf16.msra.mxu0 %v1512
      %1537 = vmatprep.subr.bf16.mxu0 0
      %1538 = vmatpush1.bf16.msra.mxu0 %v1514
      %1539 = vmatprep.subr.bf16.mxu0 0
      %1540 = vmatpush1.bf16.msra.mxu0 0
      %1541 = vmatprep.subr.bf16.mxu0 0
      %1542 = vmatpush1.bf16.msra.mxu0 0
      %1543 = vmatprep.subr.bf16.mxu0 0
      %1544 = vmatpush1.bf16.msra.mxu0 0
      %1545 = vmatprep.subr.bf16.mxu0 0
      %1546 = vmatpush1.bf16.msra.mxu0 0
      %1547 = vmatprep.subr.bf16.mxu0 0
      %1548 = vmatpush1.bf16.msra.mxu0 0
      %1549 = vmatprep.subr.bf16.mxu0 0
      %1550 = vmatpush1.bf16.msra.mxu0 0
      %1551 = vmatprep.subr.bf16.mxu0 0
      %1552 = vmatpush1.bf16.msra.mxu0 0
      %1553 = vmatprep.subr.bf16.mxu0 0
      %1554 = vmatpush1.bf16.msra.mxu0 0
      %1555 = vmatprep.mubr.bf16.mxu0 0
      %1556 = vmatmul.mubr.bf16.gmra.mrb[0].mxu0 %v1483
      %v1557 = vpop.f32.mrb[0].mxu0
      %v1558 = vadd.f32 0.0, %v1557
      %v1559 = vpop.f32.mrb[0].mxu0
      %v1560 = vpop.f32.mrb[0].mxu0
      %v1561 = vadd.f32 0.0, %v1560
      %v1562 = vpop.f32.mrb[0].mxu0
      %1563 = vmatprep.mubr.bf16.mxu0 0
      %1564 = vmatmul.mubr.bf16.gmra.mrb[0].mxu0 %v1484
      %v1565 = vpop.f32.mrb[0].mxu0
      %v1566 = vadd.f32 0.0, %v1565
      %v1567 = vpop.f32.mrb[0].mxu0
      %v1568 = vpop.f32.mrb[0].mxu0
      %v1569 = vadd.f32 0.0, %v1568
      %v1570 = vpop.f32.mrb[0].mxu0
      %1571 = vmatprep.mubr.bf16.mxu0 0
      %1572 = vmatmul.mubr.bf16.gmra.mrb[0].mxu0 %v1485
      %v1573 = vpop.f32.mrb[0].mxu0
      %v1574 = vadd.f32 0.0, %v1573
      %v1575 = vpop.f32.mrb[0].mxu0
      %v1576 = vpop.f32.mrb[0].mxu0
      %v1577 = vadd.f32 0.0, %v1576
      %v1578 = vpop.f32.mrb[0].mxu0
      %1579 = vmatprep.mubr.bf16.mxu0 0
      %1580 = vmatmul.mubr.bf16.gmra.mrb[0].mxu0 %v1486
      %v1581 = vpop.f32.mrb[0].mxu0
      %v1582 = vadd.f32 0.0, %v1581
      %v1583 = vpop.f32.mrb[0].mxu0
      %v1584 = vpop.f32.mrb[0].mxu0
      %v1585 = vadd.f32 0.0, %v1584
      %v1586 = vpop.f32.mrb[0].mxu0
      %1587 = vmatprep.mubr.bf16.mxu0 0
      %1588 = vmatmul.mubr.bf16.gmra.mrb[0].mxu0 %v1487
      %v1589 = vpop.f32.mrb[0].mxu0
      %v1590 = vadd.f32 0.0, %v1589
      %v1591 = vpop.f32.mrb[0].mxu0
      %v1592 = vpop.f32.mrb[0].mxu0
      %v1593 = vadd.f32 0.0, %v1592
      %v1594 = vpop.f32.mrb[0].mxu0
      %1595 = vmatprep.mubr.bf16.mxu0 0
      %1596 = vmatmul.mubr.bf16.gmra.mrb[0].mxu0 %v1488
      %v1597 = vpop.f32.mrb[0].mxu0
      %v1598 = vadd.f32 0.0, %v1597
      %v1599 = vpop.f32.mrb[0].mxu0
      %v1600 = vpop.f32.mrb[0].mxu0
      %v1601 = vadd.f32 0.0, %v1600
      %v1602 = vpop.f32.mrb[0].mxu0
      %1603 = vmatprep.mubr.bf16.mxu0 0
      %1604 = vmatmul.mubr.bf16.gmra.mrb[0].mxu0 %v1489
      %v1605 = vpop.f32.mrb[0].mxu0
      %v1606 = vadd.f32 0.0, %v1605
      %v1607 = vpop.f32.mrb[0].mxu0
      %v1608 = vpop.f32.mrb[0].mxu0
      %v1609 = vadd.f32 0.0, %v1608
      %v1610 = vpop.f32.mrb[0].mxu0
      %1611 = vmatprep.mubr.bf16.mxu0 0
      %1612 = vmatmul.mubr.bf16.gmra.mrb[0].mxu0 %v1490
      %v1613 = vpop.f32.mrb[0].mxu0
      %v1614 = vadd.f32 0.0, %v1613
      %v1615 = vpop.f32.mrb[0].mxu0
      %v1616 = vpop.f32.mrb[0].mxu0
      %v1617 = vadd.f32 0.0, %v1616
      %v1618 = vpop.f32.mrb[0].mxu0
      %1619 = vdwg.mxu0
      %v1620 = vadd.f32 %v1467, %v1558
      %v1621 = vadd.f32 %v1468, %v1561
      %v1622 = vadd.f32 %v1469, %v1566
      %v1623 = vadd.f32 %v1470, %v1569
      %v1624 = vadd.f32 %v1471, %v1574
      %v1625 = vadd.f32 %v1472, %v1577
      %v1626 = vadd.f32 %v1473, %v1582
      %v1627 = vadd.f32 %v1474, %v1585
      %v1628 = vadd.f32 %v1475, %v1590
      %v1629 = vadd.f32 %v1476, %v1593
      %v1630 = vadd.f32 %v1477, %v1598
      %v1631 = vadd.f32 %v1478, %v1601
      %v1632 = vadd.f32 %v1479, %v1606
      %v1633 = vadd.f32 %v1480, %v1609
      %v1634 = vadd.f32 %v1481, %v1614
      %v1635 = vadd.f32 %v1482, %v1617
      %1636 = vst.msk [vmem:[#allocation4] sm:$0xff] %vm888, %v1620
      %1637 = vst.msk [vmem:[#allocation4 + $0x8] sm:$0xff] %vm888, %v1621
      %1638 = vst.msk [vmem:[#allocation4 + $0x10] sm:$0xff] %vm888, %v1622
      %1639 = vst.msk [vmem:[#allocation4 + $0x18] sm:$0xff] %vm888, %v1623
      %1640 = vst.msk [vmem:[#allocation4 + $0x20] sm:$0xff] %vm888, %v1624
      %1641 = vst.msk [vmem:[#allocation4 + $0x28] sm:$0xff] %vm888, %v1625
      %1642 = vst.msk [vmem:[#allocation4 + $0x30] sm:$0xff] %vm888, %v1626
      %1643 = vst.msk [vmem:[#allocation4 + $0x38] sm:$0xff] %vm888, %v1627
      %1644 = vst.msk [vmem:[#allocation4 + $0x40] sm:$0xff] %vm888, %v1628
      %1645 = vst.msk [vmem:[#allocation4 + $0x48] sm:$0xff] %vm888, %v1629
      %1646 = vst.msk [vmem:[#allocation4 + $0x50] sm:$0xff] %vm888, %v1630
      %1647 = vst.msk [vmem:[#allocation4 + $0x58] sm:$0xff] %vm888, %v1631
      %1648 = vst.msk [vmem:[#allocation4 + $0x60] sm:$0xff] %vm888, %v1632
      %1649 = vst.msk [vmem:[#allocation4 + $0x68] sm:$0xff] %vm888, %v1633
      %1650 = vst.msk [vmem:[#allocation4 + $0x70] sm:$0xff] %vm888, %v1634
      %1651 = vst.msk [vmem:[#allocation4 + $0x78] sm:$0xff] %vm888, %v1635
      %1652 = vst.msk [vmem:[#allocation2] sm:$0xff] %vm1354, %v1082
      %1653 = vst.msk [vmem:[#allocation2 + $0x8] sm:$0xff] %vm1354, %v1083
      %1654 = vst.msk [vmem:[#allocation2 + $0x10] sm:$0xff] %vm1354, %v1084
      %1655 = vst.msk [vmem:[#allocation2 + $0x18] sm:$0xff] %vm1354, %v1085
      %1656 = vst.msk [vmem:[#allocation2 + $0x20] sm:$0xff] %vm1354, %v1086
      %1657 = vst.msk [vmem:[#allocation2 + $0x28] sm:$0xff] %vm1354, %v1087
      %1658 = vst.msk [vmem:[#allocation2 + $0x30] sm:$0xff] %vm1354, %v1088
      %1659 = vst.msk [vmem:[#allocation2 + $0x38] sm:$0xff] %vm1354, %v1089
      %1660 = vst.msk [vmem:[#allocation2 + $0x40] sm:$0xff] %vm1354, %v1090
      %1661 = vst.msk [vmem:[#allocation2 + $0x48] sm:$0xff] %vm1354, %v1091
      %1662 = vst.msk [vmem:[#allocation2 + $0x50] sm:$0xff] %vm1354, %v1092
      %1663 = vst.msk [vmem:[#allocation2 + $0x58] sm:$0xff] %vm1354, %v1093
      %1664 = vst.msk [vmem:[#allocation2 + $0x60] sm:$0xff] %vm1354, %v1094
      %1665 = vst.msk [vmem:[#allocation2 + $0x68] sm:$0xff] %vm1354, %v1095
      %1666 = vst.msk [vmem:[#allocation2 + $0x70] sm:$0xff] %vm1354, %v1096
      %1667 = vst.msk [vmem:[#allocation2 + $0x78] sm:$0xff] %vm1354, %v1097
      %p1668 = scmp.eq.s32.totalorder %s27, 1
      // Predicated region
      $region61: #{tpu_custom_call.1} parent=55 // pred_check
        %p1669 = pneg %p1668
      $region62: #{tpu_custom_call.1} parent=55 // pred_check_branch
        %1671 = sbr.rel (%p1669) target = $region64
      $region63: #{tpu_custom_call.1} parent=55 // pred_region
        %v1672 = vld [vmem:[#allocation3] sm:$0xff]
        %v1673 = vld [vmem:[#allocation3 + $0x8] sm:$0xff]
        %v1674 = vld [vmem:[#allocation3 + $0x10] sm:$0xff]
        %v1675 = vld [vmem:[#allocation3 + $0x18] sm:$0xff]
        %v1676 = vld [vmem:[#allocation3 + $0x20] sm:$0xff]
        %v1677 = vld [vmem:[#allocation3 + $0x28] sm:$0xff]
        %v1678 = vld [vmem:[#allocation3 + $0x30] sm:$0xff]
        %v1679 = vld [vmem:[#allocation3 + $0x38] sm:$0xff]
        %v1680 = vld [vmem:[#allocation3 + $0x40] sm:$0xff]
        %v1681 = vld [vmem:[#allocation3 + $0x48] sm:$0xff]
        %v1682 = vld [vmem:[#allocation3 + $0x50] sm:$0xff]
        %v1683 = vld [vmem:[#allocation3 + $0x58] sm:$0xff]
        %v1684 = vld [vmem:[#allocation3 + $0x60] sm:$0xff]
        %v1685 = vld [vmem:[#allocation3 + $0x68] sm:$0xff]
        %v1686 = vld [vmem:[#allocation3 + $0x70] sm:$0xff]
        %v1687 = vld [vmem:[#allocation3 + $0x78] sm:$0xff]
        %v1688 = vrcp.pop %v1672
        %v1689 = vrcp.pop %v1673
        %v1690 = vrcp.pop %v1674
        %v1691 = vrcp.pop %v1675
        %v1692 = vrcp.pop %v1676
        %v1693 = vrcp.pop %v1677
        %v1694 = vrcp.pop %v1678
        %v1695 = vrcp.pop %v1679
        %v1696 = vrcp.pop %v1680
        %v1697 = vrcp.pop %v1681
        %v1698 = vrcp.pop %v1682
        %v1699 = vrcp.pop %v1683
        %v1700 = vrcp.pop %v1684
        %v1701 = vrcp.pop %v1685
        %v1702 = vrcp.pop %v1686
        %v1703 = vrcp.pop %v1687
        %v1704 = vld [vmem:[#allocation4] sm:$0xff]
        %v1705 = vld [vmem:[#allocation4 + $0x8] sm:$0xff]
        %v1706 = vld [vmem:[#allocation4 + $0x10] sm:$0xff]
        %v1707 = vld [vmem:[#allocation4 + $0x18] sm:$0xff]
        %v1708 = vld [vmem:[#allocation4 + $0x20] sm:$0xff]
        %v1709 = vld [vmem:[#allocation4 + $0x28] sm:$0xff]
        %v1710 = vld [vmem:[#allocation4 + $0x30] sm:$0xff]
        %v1711 = vld [vmem:[#allocation4 + $0x38] sm:$0xff]
        %v1712 = vld [vmem:[#allocation4 + $0x40] sm:$0xff]
        %v1713 = vld [vmem:[#allocation4 + $0x48] sm:$0xff]
        %v1714 = vld [vmem:[#allocation4 + $0x50] sm:$0xff]
        %v1715 = vld [vmem:[#allocation4 + $0x58] sm:$0xff]
        %v1716 = vld [vmem:[#allocation4 + $0x60] sm:$0xff]
        %v1717 = vld [vmem:[#allocation4 + $0x68] sm:$0xff]
        %v1718 = vld [vmem:[#allocation4 + $0x70] sm:$0xff]
        %v1719 = vld [vmem:[#allocation4 + $0x78] sm:$0xff]
        %1721 = vset.pattern.permute.xlu0 0
        %1722 = vperm.xlu0 %1721, %v1688
        %v1723 = vpop.permute.xlu0 %1722
        %1726 = vset.pattern.permute.xlu0 0
        %1727 = vperm.xlu0 %1726, %v1689
        %v1728 = vpop.permute.xlu0 %1727
        %1731 = vset.pattern.permute.xlu0 0
        %1732 = vperm.xlu0 %1731, %v1690
        %v1733 = vpop.permute.xlu0 %1732
        %1736 = vset.pattern.permute.xlu0 0
        %1737 = vperm.xlu0 %1736, %v1691
        %v1738 = vpop.permute.xlu0 %1737
        %1741 = vset.pattern.permute.xlu0 0
        %1742 = vperm.xlu0 %1741, %v1692
        %v1743 = vpop.permute.xlu0 %1742
        %1746 = vset.pattern.permute.xlu0 0
        %1747 = vperm.xlu0 %1746, %v1693
        %v1748 = vpop.permute.xlu0 %1747
        %1751 = vset.pattern.permute.xlu0 0
        %1752 = vperm.xlu0 %1751, %v1694
        %v1753 = vpop.permute.xlu0 %1752
        %1756 = vset.pattern.permute.xlu0 0
        %1757 = vperm.xlu0 %1756, %v1695
        %v1758 = vpop.permute.xlu0 %1757
        %1761 = vset.pattern.permute.xlu0 0
        %1762 = vperm.xlu0 %1761, %v1696
        %v1763 = vpop.permute.xlu0 %1762
        %1766 = vset.pattern.permute.xlu0 0
        %1767 = vperm.xlu0 %1766, %v1697
        %v1768 = vpop.permute.xlu0 %1767
        %1771 = vset.pattern.permute.xlu0 0
        %1772 = vperm.xlu0 %1771, %v1698
        %v1773 = vpop.permute.xlu0 %1772
        %1776 = vset.pattern.permute.xlu0 0
        %1777 = vperm.xlu0 %1776, %v1699
        %v1778 = vpop.permute.xlu0 %1777
        %1781 = vset.pattern.permute.xlu0 0
        %1782 = vperm.xlu0 %1781, %v1700
        %v1783 = vpop.permute.xlu0 %1782
        %1786 = vset.pattern.permute.xlu0 0
        %1787 = vperm.xlu0 %1786, %v1701
        %v1788 = vpop.permute.xlu0 %1787
        %1791 = vset.pattern.permute.xlu0 0
        %1792 = vperm.xlu0 %1791, %v1702
        %v1793 = vpop.permute.xlu0 %1792
        %1796 = vset.pattern.permute.xlu0 0
        %1797 = vperm.xlu0 %1796, %v1703
        %v1798 = vpop.permute.xlu0 %1797
        %v1800 = vmul.f32 %v1704, %v1723
        %v1801 = vmul.f32 %v1705, %v1728
        %v1802 = vmul.f32 %v1706, %v1733
        %v1803 = vmul.f32 %v1707, %v1738
        %v1804 = vmul.f32 %v1708, %v1743
        %v1805 = vmul.f32 %v1709, %v1748
        %v1806 = vmul.f32 %v1710, %v1753
        %v1807 = vmul.f32 %v1711, %v1758
        %v1808 = vmul.f32 %v1712, %v1763
        %v1809 = vmul.f32 %v1713, %v1768
        %v1810 = vmul.f32 %v1714, %v1773
        %v1811 = vmul.f32 %v1715, %v1778
        %v1812 = vmul.f32 %v1716, %v1783
        %v1813 = vmul.f32 %v1717, %v1788
        %v1814 = vmul.f32 %v1718, %v1793
        %v1815 = vmul.f32 %v1719, %v1798
        %v1816 = vpack.c.bf16 %v1801, %v1800
        %v1817 = vpack.c.bf16 %v1803, %v1802
        %v1818 = vpack.c.bf16 %v1805, %v1804
        %v1819 = vpack.c.bf16 %v1807, %v1806
        %v1820 = vpack.c.bf16 %v1809, %v1808
        %v1821 = vpack.c.bf16 %v1811, %v1810
        %v1822 = vpack.c.bf16 %v1813, %v1812
        %v1823 = vpack.c.bf16 %v1815, %v1814
        %v1824 = vld [vmem:[%s6] sm:$0xf]
        %v1825 = vld [vmem:[%s393] sm:$0xf]
        %v1826 = vld [vmem:[%s393 + $0x4] sm:$0xf]
        %v1827 = vld [vmem:[%s393 + $0x8] sm:$0xf]
        %v1828 = vld [vmem:[%s393 + $0xc] sm:$0xf]
        %v1829 = vld [vmem:[%s393 + $0x10] sm:$0xf]
        %v1830 = vld [vmem:[%s393 + $0x14] sm:$0xf]
        %v1831 = vld [vmem:[%s393 + $0x18] sm:$0xf]
        %v1832 = vld [vmem:[%s393 + $0x1c] sm:$0xf]
        %v1833 = vld [vmem:[%s393 + $0x20] sm:$0xf]
        %v1834 = vld [vmem:[%s393 + $0x24] sm:$0xf]
        %v1835 = vld [vmem:[%s393 + $0x28] sm:$0xf]
        %v1836 = vld [vmem:[%s393 + $0x2c] sm:$0xf]
        %v1837 = vld [vmem:[%s393 + $0x30] sm:$0xf]
        %v1838 = vld [vmem:[%s393 + $0x34] sm:$0xf]
        %v1839 = vld [vmem:[%s393 + $0x38] sm:$0xf]
        %v1840 = vld [vmem:[%s393 + $0x3c] sm:$0xf]
        %v1841 = vld [vmem:[%s7] sm:$0xf]
        %v1842 = vld [vmem:[%s7 + $0x4] sm:$0xf]
        %v1859 = vunpack.c.l.b16 %v1825
        %v1860 = vunpack.c.l.b16 %v1826
        %v1861 = vunpack.c.l.b16 %v1827
        %v1862 = vunpack.c.l.b16 %v1828
        %v1863 = vunpack.c.l.b16 %v1829
        %v1864 = vunpack.c.l.b16 %v1830
        %v1865 = vunpack.c.l.b16 %v1831
        %v1866 = vunpack.c.l.b16 %v1832
        %v1867 = vunpack.c.l.b16 %v1833
        %v1868 = vunpack.c.l.b16 %v1834
        %v1869 = vunpack.c.l.b16 %v1835
        %v1870 = vunpack.c.l.b16 %v1836
        %v1871 = vunpack.c.l.b16 %v1837
        %v1872 = vunpack.c.l.b16 %v1838
        %v1873 = vunpack.c.l.b16 %v1839
        %v1874 = vunpack.c.l.b16 %v1840
        %v1875 = vpack.c.b16 %v1860, %v1859
        %v1876 = vpack.c.b16 %v1862, %v1861
        %v1877 = vpack.c.b16 %v1864, %v1863
        %v1878 = vpack.c.b16 %v1866, %v1865
        %v1879 = vpack.c.b16 %v1868, %v1867
        %v1880 = vpack.c.b16 %v1870, %v1869
        %v1881 = vpack.c.b16 %v1872, %v1871
        %v1882 = vpack.c.b16 %v1874, %v1873
        %v1885 = vunpack.c.l.b16 %v1841
        %v1886 = vunpack.c.l.b16 %v1842
        %v1887 = vpack.c.b16 %v1886, %v1885
        %v1890 = vsel %vm750, %v1875, 0
        %v1893 = vsel %vm750, %v1876, 0
        %v1896 = vsel %vm750, %v1877, 0
        %v1899 = vsel %vm750, %v1878, 0
        %v1902 = vsel %vm750, %v1879, 0
        %v1905 = vsel %vm750, %v1880, 0
        %v1908 = vsel %vm750, %v1881, 0
        %v1911 = vsel %vm750, %v1882, 0
        %1913 = vmatprep.subr.bf16.mxu0 0
        %1914 = vmatpush1.bf16.msra.mxu0 %v1887
        %1915 = vmatprep.subr.bf16.mxu0 0
        %1916 = vmatpush1.bf16.msra.mxu0 0
        %1917 = vmatprep.subr.bf16.mxu0 0
        %1918 = vmatpush1.bf16.msra.mxu0 0
        %1919 = vmatprep.subr.bf16.mxu0 0
        %1920 = vmatpush1.bf16.msra.mxu0 0
        %1921 = vmatprep.subr.bf16.mxu0 0
        %1922 = vmatpush1.bf16.msra.mxu0 0
        %1923 = vmatprep.subr.bf16.mxu0 0
        %1924 = vmatpush1.bf16.msra.mxu0 0
        %1925 = vmatprep.subr.bf16.mxu0 0
        %1926 = vmatpush1.bf16.msra.mxu0 0
        %1927 = vmatprep.subr.bf16.mxu0 0
        %1928 = vmatpush1.bf16.msra.mxu0 0
        %1929 = vmatprep.subr.bf16.mxu0 0
        %1930 = vmatpush1.bf16.msra.mxu0 0
        %1931 = vmatprep.subr.bf16.mxu0 0
        %1932 = vmatpush1.bf16.msra.mxu0 0
        %1933 = vmatprep.subr.bf16.mxu0 0
        %1934 = vmatpush1.bf16.msra.mxu0 0
        %1935 = vmatprep.subr.bf16.mxu0 0
        %1936 = vmatpush1.bf16.msra.mxu0 0
        %1937 = vmatprep.subr.bf16.mxu0 0
        %1938 = vmatpush1.bf16.msra.mxu0 0
        %1939 = vmatprep.subr.bf16.mxu0 0
        %1940 = vmatpush1.bf16.msra.mxu0 0
        %1941 = vmatprep.subr.bf16.mxu0 0
        %1942 = vmatpush1.bf16.msra.mxu0 0
        %1943 = vmatprep.subr.bf16.mxu0 0
        %1944 = vmatpush1.bf16.msra.mxu0 0
        %1945 = vmatprep.mubr.bf16.mxu0 0
        %1946 = vmatmul.mubr.bf16.gmra.mrb[0].mxu0 %v1890
        %v1947 = vpop.f32.mrb[0].mxu0
        %v1948 = vadd.f32 0.0, %v1947
        %v1949 = vpop.f32.mrb[0].mxu0
        %v1950 = vpop.f32.mrb[0].mxu0
        %v1951 = vadd.f32 0.0, %v1950
        %v1952 = vpop.f32.mrb[0].mxu0
        %1953 = vmatprep.mubr.bf16.mxu0 0
        %1954 = vmatmul.mubr.bf16.gmra.mrb[0].mxu0 %v1893
        %v1955 = vpop.f32.mrb[0].mxu0
        %v1956 = vadd.f32 0.0, %v1955
        %v1957 = vpop.f32.mrb[0].mxu0
        %v1958 = vpop.f32.mrb[0].mxu0
        %v1959 = vadd.f32 0.0, %v1958
        %v1960 = vpop.f32.mrb[0].mxu0
        %1961 = vmatprep.mubr.bf16.mxu0 0
        %1962 = vmatmul.mubr.bf16.gmra.mrb[0].mxu0 %v1896
        %v1963 = vpop.f32.mrb[0].mxu0
        %v1964 = vadd.f32 0.0, %v1963
        %v1965 = vpop.f32.mrb[0].mxu0
        %v1966 = vpop.f32.mrb[0].mxu0
        %v1967 = vadd.f32 0.0, %v1966
        %v1968 = vpop.f32.mrb[0].mxu0
        %1969 = vmatprep.mubr.bf16.mxu0 0
        %1970 = vmatmul.mubr.bf16.gmra.mrb[0].mxu0 %v1899
        %v1971 = vpop.f32.mrb[0].mxu0
        %v1972 = vadd.f32 0.0, %v1971
        %v1973 = vpop.f32.mrb[0].mxu0
        %v1974 = vpop.f32.mrb[0].mxu0
        %v1975 = vadd.f32 0.0, %v1974
        %v1976 = vpop.f32.mrb[0].mxu0
        %1977 = vmatprep.mubr.bf16.mxu0 0
        %1978 = vmatmul.mubr.bf16.gmra.mrb[0].mxu0 %v1902
        %v1979 = vpop.f32.mrb[0].mxu0
        %v1980 = vadd.f32 0.0, %v1979
        %v1981 = vpop.f32.mrb[0].mxu0
        %v1982 = vpop.f32.mrb[0].mxu0
        %v1983 = vadd.f32 0.0, %v1982
        %v1984 = vpop.f32.mrb[0].mxu0
        %1985 = vmatprep.mubr.bf16.mxu0 0
        %1986 = vmatmul.mubr.bf16.gmra.mrb[0].mxu0 %v1905
        %v1987 = vpop.f32.mrb[0].mxu0
        %v1988 = vadd.f32 0.0, %v1987
        %v1989 = vpop.f32.mrb[0].mxu0
        %v1990 = vpop.f32.mrb[0].mxu0
        %v1991 = vadd.f32 0.0, %v1990
        %v1992 = vpop.f32.mrb[0].mxu0
        %1993 = vmatprep.mubr.bf16.mxu0 0
        %1994 = vmatmul.mubr.bf16.gmra.mrb[0].mxu0 %v1908
        %v1995 = vpop.f32.mrb[0].mxu0
        %v1996 = vadd.f32 0.0, %v1995
        %v1997 = vpop.f32.mrb[0].mxu0
        %v1998 = vpop.f32.mrb[0].mxu0
        %v1999 = vadd.f32 0.0, %v1998
        %v2000 = vpop.f32.mrb[0].mxu0
        %2001 = vmatprep.mubr.bf16.mxu0 0
        %2002 = vmatmul.mubr.bf16.gmra.mrb[0].mxu0 %v1911
        %v2003 = vpop.f32.mrb[0].mxu0
        %v2004 = vadd.f32 0.0, %v2003
        %v2005 = vpop.f32.mrb[0].mxu0
        %v2006 = vpop.f32.mrb[0].mxu0
        %v2007 = vadd.f32 0.0, %v2006
        %v2008 = vpop.f32.mrb[0].mxu0
        %2009 = vdwg.mxu0
        %v2011 = vsel %vm888, %v1816, 0
        %v2014 = vsel %vm888, %v1817, 0
        %v2017 = vsel %vm888, %v1818, 0
        %v2020 = vsel %vm888, %v1819, 0
        %v2023 = vsel %vm888, %v1820, 0
        %v2026 = vsel %vm888, %v1821, 0
        %v2029 = vsel %vm888, %v1822, 0
        %v2032 = vsel %vm888, %v1823, 0
        %vm2034 = vcmask 1043456
        %v2036 = vsel %vm2034, %v1824, 0
        %2038 = vmatprep.subr.bf16.mxu0 0
        %2039 = vmatpush1.bf16.msra.mxu0 %v2036
        %2040 = vmatprep.subr.bf16.mxu0 0
        %2041 = vmatpush1.bf16.msra.mxu0 0
        %2042 = vmatprep.subr.bf16.mxu0 0
        %2043 = vmatpush1.bf16.msra.mxu0 0
        %2044 = vmatprep.subr.bf16.mxu0 0
        %2045 = vmatpush1.bf16.msra.mxu0 0
        %2046 = vmatprep.subr.bf16.mxu0 0
        %2047 = vmatpush1.bf16.msra.mxu0 0
        %2048 = vmatprep.subr.bf16.mxu0 0
        %2049 = vmatpush1.bf16.msra.mxu0 0
        %2050 = vmatprep.subr.bf16.mxu0 0
        %2051 = vmatpush1.bf16.msra.mxu0 0
        %2052 = vmatprep.subr.bf16.mxu0 0
        %2053 = vmatpush1.bf16.msra.mxu0 0
        %2054 = vmatprep.subr.bf16.mxu0 0
        %2055 = vmatpush1.bf16.msra.mxu0 0
        %2056 = vmatprep.subr.bf16.mxu0 0
        %2057 = vmatpush1.bf16.msra.mxu0 0
        %2058 = vmatprep.subr.bf16.mxu0 0
        %2059 = vmatpush1.bf16.msra.mxu0 0
        %2060 = vmatprep.subr.bf16.mxu0 0
        %2061 = vmatpush1.bf16.msra.mxu0 0
        %2062 = vmatprep.subr.bf16.mxu0 0
        %2063 = vmatpush1.bf16.msra.mxu0 0
        %2064 = vmatprep.subr.bf16.mxu0 0
        %2065 = vmatpush1.bf16.msra.mxu0 0
        %2066 = vmatprep.subr.bf16.mxu0 0
        %2067 = vmatpush1.bf16.msra.mxu0 0
        %2068 = vmatprep.subr.bf16.mxu0 0
        %2069 = vmatpush1.bf16.msra.mxu0 0
        %2070 = vmatprep.mubr.bf16.mxu0 0
        %2071 = vmatmul.mubr.bf16.gmra.mrb[0].mxu0 %v2011
        %v2072 = vpop.f32.mrb[0].mxu0
        %v2073 = vadd.f32 %v1948, %v2072
        %v2074 = vpop.f32.mrb[0].mxu0
        %v2075 = vpop.f32.mrb[0].mxu0
        %v2076 = vadd.f32 %v1951, %v2075
        %v2077 = vpop.f32.mrb[0].mxu0
        %2078 = vmatprep.mubr.bf16.mxu0 0
        %2079 = vmatmul.mubr.bf16.gmra.mrb[0].mxu0 %v2014
        %v2080 = vpop.f32.mrb[0].mxu0
        %v2081 = vadd.f32 %v1956, %v2080
        %v2082 = vpop.f32.mrb[0].mxu0
        %v2083 = vpop.f32.mrb[0].mxu0
        %v2084 = vadd.f32 %v1959, %v2083
        %v2085 = vpop.f32.mrb[0].mxu0
        %2086 = vmatprep.mubr.bf16.mxu0 0
        %2087 = vmatmul.mubr.bf16.gmra.mrb[0].mxu0 %v2017
        %v2088 = vpop.f32.mrb[0].mxu0
        %v2089 = vadd.f32 %v1964, %v2088
        %v2090 = vpop.f32.mrb[0].mxu0
        %v2091 = vpop.f32.mrb[0].mxu0
        %v2092 = vadd.f32 %v1967, %v2091
        %v2093 = vpop.f32.mrb[0].mxu0
        %2094 = vmatprep.mubr.bf16.mxu0 0
        %2095 = vmatmul.mubr.bf16.gmra.mrb[0].mxu0 %v2020
        %v2096 = vpop.f32.mrb[0].mxu0
        %v2097 = vadd.f32 %v1972, %v2096
        %v2098 = vpop.f32.mrb[0].mxu0
        %v2099 = vpop.f32.mrb[0].mxu0
        %v2100 = vadd.f32 %v1975, %v2099
        %v2101 = vpop.f32.mrb[0].mxu0
        %2102 = vmatprep.mubr.bf16.mxu0 0
        %2103 = vmatmul.mubr.bf16.gmra.mrb[0].mxu0 %v2023
        %v2104 = vpop.f32.mrb[0].mxu0
        %v2105 = vadd.f32 %v1980, %v2104
        %v2106 = vpop.f32.mrb[0].mxu0
        %v2107 = vpop.f32.mrb[0].mxu0
        %v2108 = vadd.f32 %v1983, %v2107
        %v2109 = vpop.f32.mrb[0].mxu0
        %2110 = vmatprep.mubr.bf16.mxu0 0
        %2111 = vmatmul.mubr.bf16.gmra.mrb[0].mxu0 %v2026
        %v2112 = vpop.f32.mrb[0].mxu0
        %v2113 = vadd.f32 %v1988, %v2112
        %v2114 = vpop.f32.mrb[0].mxu0
        %v2115 = vpop.f32.mrb[0].mxu0
        %v2116 = vadd.f32 %v1991, %v2115
        %v2117 = vpop.f32.mrb[0].mxu0
        %2118 = vmatprep.mubr.bf16.mxu0 0
        %2119 = vmatmul.mubr.bf16.gmra.mrb[0].mxu0 %v2029
        %v2120 = vpop.f32.mrb[0].mxu0
        %v2121 = vadd.f32 %v1996, %v2120
        %v2122 = vpop.f32.mrb[0].mxu0
        %v2123 = vpop.f32.mrb[0].mxu0
        %v2124 = vadd.f32 %v1999, %v2123
        %v2125 = vpop.f32.mrb[0].mxu0
        %2126 = vmatprep.mubr.bf16.mxu0 0
        %2127 = vmatmul.mubr.bf16.gmra.mrb[0].mxu0 %v2032
        %v2128 = vpop.f32.mrb[0].mxu0
        %v2129 = vadd.f32 %v2004, %v2128
        %v2130 = vpop.f32.mrb[0].mxu0
        %v2131 = vpop.f32.mrb[0].mxu0
        %v2132 = vadd.f32 %v2007, %v2131
        %v2133 = vpop.f32.mrb[0].mxu0
        %2134 = vdwg.mxu0
        %v2135 = vld [vmem:[%s8] sm:$0x1]
        %v2137 = vlaneseq
        %v2138 = vshrl.u32 %v2137, 7
        %v2139 = vsub.s32 0, %v2138
        %v2140 = vrot.slane %v2135, %v2139
        %v2142 = vadd.f32 %v2073, %v2140
        %v2143 = vadd.f32 %v2076, %v2140
        %v2144 = vadd.f32 %v2081, %v2140
        %v2145 = vadd.f32 %v2084, %v2140
        %v2146 = vadd.f32 %v2089, %v2140
        %v2147 = vadd.f32 %v2092, %v2140
        %v2148 = vadd.f32 %v2097, %v2140
        %v2149 = vadd.f32 %v2100, %v2140
        %v2150 = vadd.f32 %v2105, %v2140
        %v2151 = vadd.f32 %v2108, %v2140
        %v2152 = vadd.f32 %v2113, %v2140
        %v2153 = vadd.f32 %v2116, %v2140
        %v2154 = vadd.f32 %v2121, %v2140
        %v2155 = vadd.f32 %v2124, %v2140
        %v2156 = vadd.f32 %v2129, %v2140
        %v2157 = vadd.f32 %v2132, %v2140
        %2158 = vst.msk [vmem:[%s413] sm:$0xff] %vm750, %v2142
        %2159 = vst.msk [vmem:[%s413 + $0x8] sm:$0xff] %vm750, %v2143
        %2160 = vst.msk [vmem:[%s413 + $0x10] sm:$0xff] %vm750, %v2144
        %2161 = vst.msk [vmem:[%s413 + $0x18] sm:$0xff] %vm750, %v2145
        %2162 = vst.msk [vmem:[%s413 + $0x20] sm:$0xff] %vm750, %v2146
        %2163 = vst.msk [vmem:[%s413 + $0x28] sm:$0xff] %vm750, %v2147
        %2164 = vst.msk [vmem:[%s413 + $0x30] sm:$0xff] %vm750, %v2148
        %2165 = vst.msk [vmem:[%s413 + $0x38] sm:$0xff] %vm750, %v2149
        %2166 = vst.msk [vmem:[%s413 + $0x40] sm:$0xff] %vm750, %v2150
        %2167 = vst.msk [vmem:[%s413 + $0x48] sm:$0xff] %vm750, %v2151
        %2168 = vst.msk [vmem:[%s413 + $0x50] sm:$0xff] %vm750, %v2152
        %2169 = vst.msk [vmem:[%s413 + $0x58] sm:$0xff] %vm750, %v2153
        %2170 = vst.msk [vmem:[%s413 + $0x60] sm:$0xff] %vm750, %v2154
        %2171 = vst.msk [vmem:[%s413 + $0x68] sm:$0xff] %vm750, %v2155
        %2172 = vst.msk [vmem:[%s413 + $0x70] sm:$0xff] %vm750, %v2156
        %2173 = vst.msk [vmem:[%s413 + $0x78] sm:$0xff] %vm750, %v2157
      $region64: #{tpu_custom_call.1} parent=55 // pred_fallthru
        _
      %s2174 = smul.u32 16, %s26
      %p2175 = scmp.lt.s32.totalorder %s25, 1
      %s2176 = scalar_select %p2175, %s25, 1
      %p2177 = scmp.lt.s32.totalorder %s2174, 31
      %s2178 = scalar_select %p2177, %s2174, 31
      %s2179 = smul.addr %s2176, 32
      %s2180 = sadd.s32 %s2178, %s2179
      %s2181 = smul.addr %s2180, 8
      %s2182 = scalar_lea.vmem %s9, %s2181
      // Predicated region
      $region65: #{tpu_custom_call.1} parent=55 // pred_check
        %p2183 = pneg %p262
      $region66: #{tpu_custom_call.1} parent=55 // pred_check_branch
        %2185 = sbr.rel (%p2183) target = $region68
      $region67: #{tpu_custom_call.1} parent=55 // pred_region
        %s2186 = smul.u32 16, %s26
      $region68: #{tpu_custom_call.1} parent=55 // pred_fallthru
        _
    $region56: #{tpu_custom_call.1} parent=5 // pred_fallthru
      _
    %p2187 = scmp.le.s32.totalorder 2, %s15
    // Predicated region
    $region69: #{tpu_custom_call.1} parent=5 // pred_check
      %p2188 = pneg %p2187
    $region70: #{tpu_custom_call.1} parent=5 // pred_check_branch
      %2190 = sbr.rel (%p2188) target = $region72
    $region71: #{tpu_custom_call.1} parent=5 // pred_region
      %s2191 = ssub.s32 %s15, 2
      // Predicated region
      $region73: #{tpu_custom_call.1} parent=71 // pred_check
        %p2192 = pneg %p268
      $region74: #{tpu_custom_call.1} parent=71 // pred_check_branch
        %2194 = sbr.rel (%p2192) target = $region76
      $region75: #{tpu_custom_call.1} parent=71 // pred_region
        %s2195 = smul.u32 16, %s29
        %p2196 = scmp.lt.s32.totalorder %s28, 1
        %s2197 = scalar_select %p2196, %s28, 1
        %p2198 = scmp.lt.s32.totalorder %s2195, 31
        %s2199 = scalar_select %p2198, %s2195, 31
        %s2200 = smul.addr %s2197, 32
        %s2201 = sadd.s32 %s2199, %s2200
        %s2202 = smul.addr %s2201, 8
        %s2203 = scalar_lea.vmem %s9, %s2202
      $region76: #{tpu_custom_call.1} parent=71 // pred_fallthru
        _
    $region72: #{tpu_custom_call.1} parent=5 // pred_fallthru
      _
  $region6: #{tpu_custom_call.1} parent=0 // loop_footer
    %s19 = sadd.s32 1, %s15
  $region7: #{tpu_custom_call.1} parent=0 // loop_footer_branch
    %14 = sbr.rel target = $region3
  $region8: #{tpu_custom_call.1} parent=0 // loop_exit
    _

</llo_original>
